<compile_context>
chip_gen: v5e
topology: v5e:2x2
jax: 0.10.0
libtpu: 0.0.40
codegen_flags: <defaults>
</compile_context>

<pallas_src>
import functools
import math

import jax
import jax.numpy as jnp
import numpy as np
from jax.experimental import pallas as pl
from jax.experimental.pallas import tpu as pltpu


# ----------------- Fused kernel: plain LN + folded projection(+bias) + temporal attention -----------------
def freq_attn_kernel(q_ref, kv_ref, w_ref, b_ref, o_ref, *, heads, eps):
    _, s_len, c, xt = q_ref.shape                  # (1, S, C, Xtile)
    t_len = kv_ref.shape[1]
    d = c // heads

    w_all = w_ref[0].astype(jnp.float32)           # (3C, C) = [Wq*scale*g_q; Wk*g_kv; Wv*g_kv]
    b_all = b_ref[0].astype(jnp.float32)           # (3C, 1) = [Wq*scale@b_q; Wk@b_kv; Wv@b_kv]
    wq, wkv = w_all[:c], w_all[c:]                 # (C, C), (2C, C)  fused K/V projection
    bq, bkv = b_all[:c], b_all[c:]                 # (C, 1), (2C, 1)

    def layer_norm_plain(x):
        xf = x.astype(jnp.float32)                 # (L, C, Xt), C on sublanes, Xt on lanes
        mu = jnp.mean(xf, axis=1, keepdims=True)
        dx = xf - mu
        # torch.var(dim=...) is unbiased (correction = 1)
        var = jnp.sum(dx * dx, axis=1, keepdims=True) * (1.0 / (c - 1))
        return dx * jax.lax.rsqrt(var + eps)       # gamma/beta folded into wq/wkv/bq/bkv

    q_ln = layer_norm_plain(q_ref[0])              # (S, C, Xt)
    kv_ln = layer_norm_plain(kv_ref[0])            # (T, C, Xt)

    # Channel projections on the MXU; attention scale + LN affine already folded into weights.
    q_h = [
        (jnp.dot(wq, q_ln[s], preferred_element_type=jnp.float32) + bq).reshape(heads, d, xt)
        for s in range(s_len)
    ]
    k_h, v_h = [], []
    for t in range(t_len):
        ykv = jnp.dot(wkv, kv_ln[t], preferred_element_type=jnp.float32) + bkv   # (2C, Xt)
        k_h.append(ykv[:c].reshape(heads, d, xt))
        v_h.append(ykv[c:].reshape(heads, d, xt))

    # Temporal attention, fully unrolled; largest live intermediate is (heads, D, Xt).
    for s in range(s_len):
        scores = [jnp.sum(q_h[s] * k_h[t], axis=1) for t in range(t_len)]  # (heads, Xt)
        m = scores[0]
        for t in range(1, t_len):
            m = jnp.maximum(m, scores[t])
        exps = [jnp.exp(sc - m) for sc in scores]
        denom = exps[0]
        for t in range(1, t_len):
            denom = denom + exps[t]
        acc = exps[0][:, None, :] * v_h[0]                                 # (heads, D, Xt)
        for t in range(1, t_len):
            acc = acc + exps[t][:, None, :] * v_h[t]
        inv = pl.reciprocal(denom, approx=False)[:, None, :]               # one recip per (s,h,x)
        o_ref[0, s] = (acc * inv).reshape(c, xt).astype(o_ref.dtype)       # unmasked (C, Xt) store


def _pick_x_tile(x_total, s_len, t_len, c, itemsize=4, budget_bytes=8 * 1024 * 1024):
    """Largest multiple-of-128 divisor of x_total whose double-buffered q/kv/out blocks fit budget."""
    if x_total % 128 != 0:
        return x_total                                    # full-extent block is always legal
    per_x = itemsize * c * 2 * (2 * s_len + t_len)        # double-buffered q, out (S each) + kv (T)
    cap = max(128, min(x_total, (budget_bytes // per_x) // 128 * 128))
    tile = 128
    for cand in range(128, cap + 1, 128):
        if x_total % cand == 0:
            tile = cand
    return tile


# ----------------------------- Parameter setup (LinSpace) -----------------------------
def linspace_weights(p1, p2, n):
    # LinSpace.forward: out[i] = p1 * (i/(n-1)) + p2 * (1 - i/(n-1)); soft_clip = identity (lb=ub=None)
    w = jnp.arange(n, dtype=jnp.float32) / (n - 1)
    w = w.reshape((n,) + (1,) * p1.ndim)
    return p1[None] * w + p2[None] * (1.0 - w)


def init_params(key, ch):
    ks = jax.random.split(key, 10)

    def tn(k, shape):
        std = 2.0 / math.sqrt(shape[-1])
        return std * jax.random.truncated_normal(k, -2.0, 2.0, shape, jnp.float32)

    return {
        "ln_q": (tn(ks[0], (2, ch)), tn(ks[1], (2, ch))),
        "ln_kv": (tn(ks[2], (2, ch)), tn(ks[3], (2, ch))),
        "proj_q": (tn(ks[4], (ch, ch)), tn(ks[5], (ch, ch))),
        "proj_k": (tn(ks[6], (ch, ch)), tn(ks[7], (ch, ch))),
        "proj_v": (tn(ks[8], (ch, ch)), tn(ks[9], (ch, ch))),
    }


# ----------------------------- Forward (glue + fused kernel) -----------------------------
def freq_attention(q, kv, params, heads, eps=1e-5):
    b, s_len, n, c, h, w = q.shape
    t_len = kv.shape[1]
    assert c % heads == 0
    d = c // heads
    x_total = b * h * w
    scale = 1.0 / math.sqrt(d)

    # Expand LinSpace params to per-frequency weights (soft_clip is identity: lb=ub=None).
    ln_q = linspace_weights(*params["ln_q"], n)                            # (N, 2, C)
    ln_kv = linspace_weights(*params["ln_kv"], n)
    g_q, b_q = ln_q[:, 0, :], ln_q[:, 1, :]                                # (N, C)
    g_kv, b_kv = ln_kv[:, 0, :], ln_kv[:, 1, :]
    wq = linspace_weights(*params["proj_q"], n) * scale                    # (N, C, C) (out, in)
    wk = linspace_weights(*params["proj_k"], n)
    wv = linspace_weights(*params["proj_v"], n)

    # Fold LN affine into projections: W @ (xhat*g + b) == (W * g) @ xhat + W @ b
    wq_f = wq * g_q[:, None, :]
    wk_f = wk * g_kv[:, None, :]
    wv_f = wv * g_kv[:, None, :]
    bq_f = jnp.einsum("noc,nc->no", wq, b_q)
    bk_f = jnp.einsum("noc,nc->no", wk, b_kv)
    bv_f = jnp.einsum("noc,nc->no", wv, b_kv)
    w_all = jnp.concatenate([wq_f, wk_f, wv_f], axis=1)                    # (N, 3C, C)
    b_all = jnp.concatenate([bq_f, bk_f, bv_f], axis=1)[..., None]         # (N, 3C, 1)

    # (B, len, N, C, H, W) -> (N, len, C, X) with X = B*H*W on the lane axis.
    q_l = jnp.transpose(q, (2, 1, 3, 0, 4, 5)).reshape(n, s_len, c, x_total)
    kv_l = jnp.transpose(kv, (2, 1, 3, 0, 4, 5)).reshape(n, t_len, c, x_total)

    x_tile = _pick_x_tile(x_total, s_len, t_len, c)
    grid = (n, x_total // x_tile)

    kernel = functools.partial(freq_attn_kernel, heads=heads, eps=eps)

    flops = n * x_total * (
        6 * (s_len + t_len) * c                       # layer norms
        + 2 * c * c * (s_len + 2 * t_len)             # channel projections (MXU)
        + (s_len + 2 * t_len) * c                     # bias adds
        + s_len * t_len * (4 * c + 6 * heads))        # attention
    transcendentals = n * x_total * (s_len * t_len * heads + (s_len + t_len) + s_len * heads)
    bytes_accessed = 4 * (q_l.size + kv_l.size + n * s_len * c * x_total
                          + w_all.size + b_all.size)

    out_l = pl.pallas_call(
        kernel,
        out_shape=jax.ShapeDtypeStruct((n, s_len, c, x_total), q.dtype),
        grid_spec=pltpu.PrefetchScalarGridSpec(
            num_scalar_prefetch=0,
            grid=grid,
            in_specs=[
                pl.BlockSpec((1, s_len, c, x_tile), lambda i, j: (i, 0, 0, j)),
                pl.BlockSpec((1, t_len, c, x_tile), lambda i, j: (i, 0, 0, j)),
                pl.BlockSpec((1, 3 * c, c), lambda i, j: (i, 0, 0)),
                pl.BlockSpec((1, 3 * c, 1), lambda i, j: (i, 0, 0)),
            ],
            out_specs=pl.BlockSpec((1, s_len, c, x_tile), lambda i, j: (i, 0, 0, j)),
        ),
        compiler_params=pltpu.CompilerParams(
            dimension_semantics=("parallel", "parallel"),
            vmem_limit_bytes=48 * 1024 * 1024,
        ),
        cost_estimate=pl.CostEstimate(
            flops=int(flops),
            transcendentals=int(transcendentals),
            bytes_accessed=int(bytes_accessed)),
    )(q_l, kv_l, w_all, b_all)

    # (N, S, C, X) -> (B, S, N, C, H, W)
    out = out_l.reshape(n, s_len, c, b, h, w)
    return jnp.transpose(out, (3, 1, 0, 2, 4, 5))


# ----------------------------- Pure-JAX reference (mirrors PyTorch) -----------------------------
def freq_attention_ref(q, kv, params, heads, eps=1e-5):
    b, s, n, c, h, w = q.shape
    t = kv.shape[1]
    d = c // heads
    ln_q = linspace_weights(*params["ln_q"], n)
    ln_kv = linspace_weights(*params["ln_kv"], n)
    wq = linspace_weights(*params["proj_q"], n)                       # (N, out, in)
    wk = linspace_weights(*params["proj_k"], n)
    wv = linspace_weights(*params["proj_v"], n)

    def ln(x, prm):
        g = prm[:, 0, :].reshape(1, n, c, 1, 1)
        be = prm[:, 1, :].reshape(1, n, c, 1, 1)
        mu = x.mean(axis=2, keepdims=True)
        var = x.var(axis=2, keepdims=True, ddof=1)
        return (x - mu) / jnp.sqrt(var + eps) * g + be

    def proj(x, wmat):
        return jnp.einsum("bnihw,noi->bnohw", x, wmat)

    qf = q.reshape(b * s, n, c, h, w)
    kvf = kv.reshape(b * t, n, c, h, w)
    qq = proj(ln(qf, ln_q), wq).reshape(b, s, n, heads, d, h, w)
    kk = proj(ln(kvf, ln_kv), wk).reshape(b, t, n, heads, d, h, w)
    vv = proj(ln(kvf, ln_kv), wv).reshape(b, t, n, heads, d, h, w)
    qq = jnp.transpose(qq, (0, 2, 3, 5, 6, 1, 4))
    kk = jnp.transpose(kk, (0, 2, 3, 5, 6, 4, 1))
    vv = jnp.transpose(vv, (0, 2, 3, 5, 6, 1, 4))
    score = jnp.matmul(qq, kk) / math.sqrt(d)
    attn = jax.nn.softmax(score, axis=-1)
    out = jnp.matmul(attn, vv)
    out = jnp.transpose(out, (0, 5, 1, 2, 6, 3, 4))
    return out.reshape(b, s, n, c, h, w)


if __name__ == "__main__":
    B, S, T, N, C, H, W, HEADS = 2, 4, 4, 4, 32, 8, 8, 4
    key = jax.random.PRNGKey(0)
    kq, kkv, kp = jax.random.split(key, 3)
    q = jax.random.normal(kq, (B, S, N, C, H, W), jnp.float32)
    kv = jax.random.normal(kkv, (B, T, N, C, H, W), jnp.float32)
    params = init_params(kp, C)

    out = jax.block_until_ready(freq_attention(q, kv, params, HEADS))
    ref = jax.block_until_ready(freq_attention_ref(q, kv, params, HEADS))
    assert out.shape == (B, S, N, C, H, W)
    np.testing.assert_allclose(np.asarray(out), np.asarray(ref), rtol=2e-4, atol=2e-4)
    print("KERNEL_OK")
</pallas_src>

<mosaic_0001>
module attributes {stable_mosaic.version = 11 : i64} {
  func.func @freq_attn_kernel(%arg0: i32, %arg1: i32, %arg2: memref<1x4x32x128xf32, #tpu.memory_space<vmem>>, %arg3: memref<1x4x32x128xf32, #tpu.memory_space<vmem>>, %arg4: memref<1x96x32xf32, #tpu.memory_space<vmem>>, %arg5: memref<1x96x1xf32, #tpu.memory_space<vmem>>, %arg6: memref<1x4x32x128xf32, #tpu.memory_space<vmem>>) attributes {dimension_semantics = [#tpu.dimension_semantics<parallel>, #tpu.dimension_semantics<parallel>], iteration_bounds = array<i64: 4, 1>, scalar_prefetch = 0 : i64, scratch_operands = 0 : i64, tpu.core_type = #tpu.core_type<tc>, window_params = [{transform_indices = @transform_0, window_bounds = array<i64: 1, 4, 32, 128>}, {transform_indices = @transform_1, window_bounds = array<i64: 1, 4, 32, 128>}, {transform_indices = @transform_2, window_bounds = array<i64: 1, 96, 32>}, {transform_indices = @transform_3, window_bounds = array<i64: 1, 96, 1>}, {transform_indices = @transform_4, window_bounds = array<i64: 1, 4, 32, 128>}]} {
    %c0 = arith.constant 0 : index
    %c0_0 = arith.constant 0 : index
    %c0_1 = arith.constant 0 : index
    %0 = vector.load %arg4[%c0, %c0_0, %c0_1] : memref<1x96x32xf32, #tpu.memory_space<vmem>>, vector<1x96x32xf32>
    %1 = vector.shape_cast %0 : vector<1x96x32xf32> to vector<96x32xf32>
    %c0_2 = arith.constant 0 : index
    %c0_3 = arith.constant 0 : index
    %c0_4 = arith.constant 0 : index
    %2 = vector.load %arg5[%c0_2, %c0_3, %c0_4] : memref<1x96x1xf32, #tpu.memory_space<vmem>>, vector<1x96x1xf32>
    %3 = vector.shape_cast %2 : vector<1x96x1xf32> to vector<96x1xf32>
    %4 = vector.extract_strided_slice %1 {offsets = [0, 0], sizes = [32, 32], strides = [1, 1]} : vector<96x32xf32> to vector<32x32xf32>
    %5 = vector.extract_strided_slice %1 {offsets = [32, 0], sizes = [64, 32], strides = [1, 1]} : vector<96x32xf32> to vector<64x32xf32>
    %6 = vector.extract_strided_slice %3 {offsets = [0, 0], sizes = [32, 1], strides = [1, 1]} : vector<96x1xf32> to vector<32x1xf32>
    %7 = vector.extract_strided_slice %3 {offsets = [32, 0], sizes = [64, 1], strides = [1, 1]} : vector<96x1xf32> to vector<64x1xf32>
    %c0_5 = arith.constant 0 : index
    %c0_6 = arith.constant 0 : index
    %c0_7 = arith.constant 0 : index
    %c0_8 = arith.constant 0 : index
    %8 = vector.load %arg2[%c0_5, %c0_6, %c0_7, %c0_8] : memref<1x4x32x128xf32, #tpu.memory_space<vmem>>, vector<1x4x32x128xf32>
    %9 = vector.shape_cast %8 : vector<1x4x32x128xf32> to vector<4x32x128xf32>
    %cst = arith.constant dense<0.000000e+00> : vector<4x128xf32>
    %10 = vector.multi_reduction <add>, %9, %cst [1] : vector<4x32x128xf32> to vector<4x128xf32>
    %11 = vector.shape_cast %10 : vector<4x128xf32> to vector<4x1x128xf32>
    %cst_9 = arith.constant 3.200000e+01 : f32
    %12 = vector.broadcast %cst_9 : f32 to vector<4x1x128xf32>
    %13 = arith.divf %11, %12 : vector<4x1x128xf32>
    %14 = vector.broadcast %13 : vector<4x1x128xf32> to vector<4x32x128xf32>
    %15 = arith.subf %9, %14 : vector<4x32x128xf32>
    %16 = arith.mulf %15, %15 : vector<4x32x128xf32>
    %cst_10 = arith.constant dense<0.000000e+00> : vector<4x128xf32>
    %17 = vector.multi_reduction <add>, %16, %cst_10 [1] : vector<4x32x128xf32> to vector<4x128xf32>
    %18 = vector.shape_cast %17 : vector<4x128xf32> to vector<4x1x128xf32>
    %cst_11 = arith.constant 0.0322580636 : f32
    %19 = vector.broadcast %cst_11 : f32 to vector<4x1x128xf32>
    %20 = arith.mulf %18, %19 : vector<4x1x128xf32>
    %cst_12 = arith.constant 9.99999974E-6 : f32
    %21 = vector.broadcast %cst_12 : f32 to vector<4x1x128xf32>
    %22 = arith.addf %20, %21 : vector<4x1x128xf32>
    %23 = math.rsqrt %22 : vector<4x1x128xf32>
    %24 = vector.broadcast %23 : vector<4x1x128xf32> to vector<4x32x128xf32>
    %25 = arith.mulf %15, %24 : vector<4x32x128xf32>
    %c0_13 = arith.constant 0 : index
    %c0_14 = arith.constant 0 : index
    %c0_15 = arith.constant 0 : index
    %c0_16 = arith.constant 0 : index
    %26 = vector.load %arg3[%c0_13, %c0_14, %c0_15, %c0_16] : memref<1x4x32x128xf32, #tpu.memory_space<vmem>>, vector<1x4x32x128xf32>
    %27 = vector.shape_cast %26 : vector<1x4x32x128xf32> to vector<4x32x128xf32>
    %cst_17 = arith.constant dense<0.000000e+00> : vector<4x128xf32>
    %28 = vector.multi_reduction <add>, %27, %cst_17 [1] : vector<4x32x128xf32> to vector<4x128xf32>
    %29 = vector.shape_cast %28 : vector<4x128xf32> to vector<4x1x128xf32>
    %cst_18 = arith.constant 3.200000e+01 : f32
    %30 = vector.broadcast %cst_18 : f32 to vector<4x1x128xf32>
    %31 = arith.divf %29, %30 : vector<4x1x128xf32>
    %32 = vector.broadcast %31 : vector<4x1x128xf32> to vector<4x32x128xf32>
    %33 = arith.subf %27, %32 : vector<4x32x128xf32>
    %34 = arith.mulf %33, %33 : vector<4x32x128xf32>
    %cst_19 = arith.constant dense<0.000000e+00> : vector<4x128xf32>
    %35 = vector.multi_reduction <add>, %34, %cst_19 [1] : vector<4x32x128xf32> to vector<4x128xf32>
    %36 = vector.shape_cast %35 : vector<4x128xf32> to vector<4x1x128xf32>
    %cst_20 = arith.constant 0.0322580636 : f32
    %37 = vector.broadcast %cst_20 : f32 to vector<4x1x128xf32>
    %38 = arith.mulf %36, %37 : vector<4x1x128xf32>
    %cst_21 = arith.constant 9.99999974E-6 : f32
    %39 = vector.broadcast %cst_21 : f32 to vector<4x1x128xf32>
    %40 = arith.addf %38, %39 : vector<4x1x128xf32>
    %41 = math.rsqrt %40 : vector<4x1x128xf32>
    %42 = vector.broadcast %41 : vector<4x1x128xf32> to vector<4x32x128xf32>
    %43 = arith.mulf %33, %42 : vector<4x32x128xf32>
    %44 = vector.extract_strided_slice %25 {offsets = [0, 0, 0], sizes = [1, 32, 128], strides = [1, 1, 1]} : vector<4x32x128xf32> to vector<1x32x128xf32>
    %45 = vector.shape_cast %44 : vector<1x32x128xf32> to vector<32x128xf32>
    %cst_22 = arith.constant dense<0.000000e+00> : vector<32x128xf32>
    %46 = tpu.matmul %4, %45, %cst_22 {dimension_numbers = #tpu.dot_dimension_numbers<[1], [0], [0], [1], [0, 0, 1, 1], [], []>} : vector<32x32xf32>, vector<32x128xf32>, vector<32x128xf32> -> vector<32x128xf32>
    %47 = vector.broadcast %6 : vector<32x1xf32> to vector<32x128xf32>
    %48 = arith.addf %46, %47 : vector<32x128xf32>
    %49 = vector.shape_cast %48 : vector<32x128xf32> to vector<4x8x128xf32>
    %50 = vector.extract_strided_slice %25 {offsets = [1, 0, 0], sizes = [1, 32, 128], strides = [1, 1, 1]} : vector<4x32x128xf32> to vector<1x32x128xf32>
    %51 = vector.shape_cast %50 : vector<1x32x128xf32> to vector<32x128xf32>
    %cst_23 = arith.constant dense<0.000000e+00> : vector<32x128xf32>
    %52 = tpu.matmul %4, %51, %cst_23 {dimension_numbers = #tpu.dot_dimension_numbers<[1], [0], [0], [1], [0, 0, 1, 1], [], []>} : vector<32x32xf32>, vector<32x128xf32>, vector<32x128xf32> -> vector<32x128xf32>
    %53 = vector.broadcast %6 : vector<32x1xf32> to vector<32x128xf32>
    %54 = arith.addf %52, %53 : vector<32x128xf32>
    %55 = vector.shape_cast %54 : vector<32x128xf32> to vector<4x8x128xf32>
    %56 = vector.extract_strided_slice %25 {offsets = [2, 0, 0], sizes = [1, 32, 128], strides = [1, 1, 1]} : vector<4x32x128xf32> to vector<1x32x128xf32>
    %57 = vector.shape_cast %56 : vector<1x32x128xf32> to vector<32x128xf32>
    %cst_24 = arith.constant dense<0.000000e+00> : vector<32x128xf32>
    %58 = tpu.matmul %4, %57, %cst_24 {dimension_numbers = #tpu.dot_dimension_numbers<[1], [0], [0], [1], [0, 0, 1, 1], [], []>} : vector<32x32xf32>, vector<32x128xf32>, vector<32x128xf32> -> vector<32x128xf32>
    %59 = vector.broadcast %6 : vector<32x1xf32> to vector<32x128xf32>
    %60 = arith.addf %58, %59 : vector<32x128xf32>
    %61 = vector.shape_cast %60 : vector<32x128xf32> to vector<4x8x128xf32>
    %62 = vector.extract_strided_slice %25 {offsets = [3, 0, 0], sizes = [1, 32, 128], strides = [1, 1, 1]} : vector<4x32x128xf32> to vector<1x32x128xf32>
    %63 = vector.shape_cast %62 : vector<1x32x128xf32> to vector<32x128xf32>
    %cst_25 = arith.constant dense<0.000000e+00> : vector<32x128xf32>
    %64 = tpu.matmul %4, %63, %cst_25 {dimension_numbers = #tpu.dot_dimension_numbers<[1], [0], [0], [1], [0, 0, 1, 1], [], []>} : vector<32x32xf32>, vector<32x128xf32>, vector<32x128xf32> -> vector<32x128xf32>
    %65 = vector.broadcast %6 : vector<32x1xf32> to vector<32x128xf32>
    %66 = arith.addf %64, %65 : vector<32x128xf32>
    %67 = vector.shape_cast %66 : vector<32x128xf32> to vector<4x8x128xf32>
    %68 = vector.extract_strided_slice %43 {offsets = [0, 0, 0], sizes = [1, 32, 128], strides = [1, 1, 1]} : vector<4x32x128xf32> to vector<1x32x128xf32>
    %69 = vector.shape_cast %68 : vector<1x32x128xf32> to vector<32x128xf32>
    %cst_26 = arith.constant dense<0.000000e+00> : vector<64x128xf32>
    %70 = tpu.matmul %5, %69, %cst_26 {dimension_numbers = #tpu.dot_dimension_numbers<[1], [0], [0], [1], [0, 0, 1, 1], [], []>} : vector<64x32xf32>, vector<32x128xf32>, vector<64x128xf32> -> vector<64x128xf32>
    %71 = vector.broadcast %7 : vector<64x1xf32> to vector<64x128xf32>
    %72 = arith.addf %70, %71 : vector<64x128xf32>
    %73 = vector.extract_strided_slice %72 {offsets = [0, 0], sizes = [32, 128], strides = [1, 1]} : vector<64x128xf32> to vector<32x128xf32>
    %74 = vector.shape_cast %73 : vector<32x128xf32> to vector<4x8x128xf32>
    %75 = vector.extract_strided_slice %72 {offsets = [32, 0], sizes = [32, 128], strides = [1, 1]} : vector<64x128xf32> to vector<32x128xf32>
    %76 = vector.shape_cast %75 : vector<32x128xf32> to vector<4x8x128xf32>
    %77 = vector.extract_strided_slice %43 {offsets = [1, 0, 0], sizes = [1, 32, 128], strides = [1, 1, 1]} : vector<4x32x128xf32> to vector<1x32x128xf32>
    %78 = vector.shape_cast %77 : vector<1x32x128xf32> to vector<32x128xf32>
    %cst_27 = arith.constant dense<0.000000e+00> : vector<64x128xf32>
    %79 = tpu.matmul %5, %78, %cst_27 {dimension_numbers = #tpu.dot_dimension_numbers<[1], [0], [0], [1], [0, 0, 1, 1], [], []>} : vector<64x32xf32>, vector<32x128xf32>, vector<64x128xf32> -> vector<64x128xf32>
    %80 = vector.broadcast %7 : vector<64x1xf32> to vector<64x128xf32>
    %81 = arith.addf %79, %80 : vector<64x128xf32>
    %82 = vector.extract_strided_slice %81 {offsets = [0, 0], sizes = [32, 128], strides = [1, 1]} : vector<64x128xf32> to vector<32x128xf32>
    %83 = vector.shape_cast %82 : vector<32x128xf32> to vector<4x8x128xf32>
    %84 = vector.extract_strided_slice %81 {offsets = [32, 0], sizes = [32, 128], strides = [1, 1]} : vector<64x128xf32> to vector<32x128xf32>
    %85 = vector.shape_cast %84 : vector<32x128xf32> to vector<4x8x128xf32>
    %86 = vector.extract_strided_slice %43 {offsets = [2, 0, 0], sizes = [1, 32, 128], strides = [1, 1, 1]} : vector<4x32x128xf32> to vector<1x32x128xf32>
    %87 = vector.shape_cast %86 : vector<1x32x128xf32> to vector<32x128xf32>
    %cst_28 = arith.constant dense<0.000000e+00> : vector<64x128xf32>
    %88 = tpu.matmul %5, %87, %cst_28 {dimension_numbers = #tpu.dot_dimension_numbers<[1], [0], [0], [1], [0, 0, 1, 1], [], []>} : vector<64x32xf32>, vector<32x128xf32>, vector<64x128xf32> -> vector<64x128xf32>
    %89 = vector.broadcast %7 : vector<64x1xf32> to vector<64x128xf32>
    %90 = arith.addf %88, %89 : vector<64x128xf32>
    %91 = vector.extract_strided_slice %90 {offsets = [0, 0], sizes = [32, 128], strides = [1, 1]} : vector<64x128xf32> to vector<32x128xf32>
    %92 = vector.shape_cast %91 : vector<32x128xf32> to vector<4x8x128xf32>
    %93 = vector.extract_strided_slice %90 {offsets = [32, 0], sizes = [32, 128], strides = [1, 1]} : vector<64x128xf32> to vector<32x128xf32>
    %94 = vector.shape_cast %93 : vector<32x128xf32> to vector<4x8x128xf32>
    %95 = vector.extract_strided_slice %43 {offsets = [3, 0, 0], sizes = [1, 32, 128], strides = [1, 1, 1]} : vector<4x32x128xf32> to vector<1x32x128xf32>
    %96 = vector.shape_cast %95 : vector<1x32x128xf32> to vector<32x128xf32>
    %cst_29 = arith.constant dense<0.000000e+00> : vector<64x128xf32>
    %97 = tpu.matmul %5, %96, %cst_29 {dimension_numbers = #tpu.dot_dimension_numbers<[1], [0], [0], [1], [0, 0, 1, 1], [], []>} : vector<64x32xf32>, vector<32x128xf32>, vector<64x128xf32> -> vector<64x128xf32>
    %98 = vector.broadcast %7 : vector<64x1xf32> to vector<64x128xf32>
    %99 = arith.addf %97, %98 : vector<64x128xf32>
    %100 = vector.extract_strided_slice %99 {offsets = [0, 0], sizes = [32, 128], strides = [1, 1]} : vector<64x128xf32> to vector<32x128xf32>
    %101 = vector.shape_cast %100 : vector<32x128xf32> to vector<4x8x128xf32>
    %102 = vector.extract_strided_slice %99 {offsets = [32, 0], sizes = [32, 128], strides = [1, 1]} : vector<64x128xf32> to vector<32x128xf32>
    %103 = vector.shape_cast %102 : vector<32x128xf32> to vector<4x8x128xf32>
    %104 = arith.mulf %49, %74 : vector<4x8x128xf32>
    %cst_30 = arith.constant dense<0.000000e+00> : vector<4x128xf32>
    %105 = vector.multi_reduction <add>, %104, %cst_30 [1] : vector<4x8x128xf32> to vector<4x128xf32>
    %106 = arith.mulf %49, %83 : vector<4x8x128xf32>
    %cst_31 = arith.constant dense<0.000000e+00> : vector<4x128xf32>
    %107 = vector.multi_reduction <add>, %106, %cst_31 [1] : vector<4x8x128xf32> to vector<4x128xf32>
    %108 = arith.mulf %49, %92 : vector<4x8x128xf32>
    %cst_32 = arith.constant dense<0.000000e+00> : vector<4x128xf32>
    %109 = vector.multi_reduction <add>, %108, %cst_32 [1] : vector<4x8x128xf32> to vector<4x128xf32>
    %110 = arith.mulf %49, %101 : vector<4x8x128xf32>
    %cst_33 = arith.constant dense<0.000000e+00> : vector<4x128xf32>
    %111 = vector.multi_reduction <add>, %110, %cst_33 [1] : vector<4x8x128xf32> to vector<4x128xf32>
    %112 = arith.maximumf %105, %107 : vector<4x128xf32>
    %113 = arith.maximumf %112, %109 : vector<4x128xf32>
    %114 = arith.maximumf %113, %111 : vector<4x128xf32>
    %115 = arith.subf %105, %114 : vector<4x128xf32>
    %116 = math.exp %115 : vector<4x128xf32>
    %117 = arith.subf %107, %114 : vector<4x128xf32>
    %118 = math.exp %117 : vector<4x128xf32>
    %119 = arith.subf %109, %114 : vector<4x128xf32>
    %120 = math.exp %119 : vector<4x128xf32>
    %121 = arith.subf %111, %114 : vector<4x128xf32>
    %122 = math.exp %121 : vector<4x128xf32>
    %123 = arith.addf %116, %118 : vector<4x128xf32>
    %124 = arith.addf %123, %120 : vector<4x128xf32>
    %125 = arith.addf %124, %122 : vector<4x128xf32>
    %126 = vector.shape_cast %116 : vector<4x128xf32> to vector<4x1x128xf32>
    %127 = vector.broadcast %126 : vector<4x1x128xf32> to vector<4x8x128xf32>
    %128 = arith.mulf %127, %76 : vector<4x8x128xf32>
    %129 = vector.shape_cast %118 : vector<4x128xf32> to vector<4x1x128xf32>
    %130 = vector.broadcast %129 : vector<4x1x128xf32> to vector<4x8x128xf32>
    %131 = arith.mulf %130, %85 : vector<4x8x128xf32>
    %132 = arith.addf %128, %131 : vector<4x8x128xf32>
    %133 = vector.shape_cast %120 : vector<4x128xf32> to vector<4x1x128xf32>
    %134 = vector.broadcast %133 : vector<4x1x128xf32> to vector<4x8x128xf32>
    %135 = arith.mulf %134, %94 : vector<4x8x128xf32>
    %136 = arith.addf %132, %135 : vector<4x8x128xf32>
    %137 = vector.shape_cast %122 : vector<4x128xf32> to vector<4x1x128xf32>
    %138 = vector.broadcast %137 : vector<4x1x128xf32> to vector<4x8x128xf32>
    %139 = arith.mulf %138, %103 : vector<4x8x128xf32>
    %140 = arith.addf %136, %139 : vector<4x8x128xf32>
    %141 = tpu.reciprocal %125 : vector<4x128xf32> -> vector<4x128xf32>
    %142 = vector.shape_cast %141 : vector<4x128xf32> to vector<4x1x128xf32>
    %143 = vector.broadcast %142 : vector<4x1x128xf32> to vector<4x8x128xf32>
    %144 = arith.mulf %140, %143 : vector<4x8x128xf32>
    %145 = vector.shape_cast %144 : vector<4x8x128xf32> to vector<32x128xf32>
    %c0_34 = arith.constant 0 : index
    %c0_35 = arith.constant 0 : index
    %c0_36 = arith.constant 0 : index
    %c0_37 = arith.constant 0 : index
    %146 = vector.load %arg6[%c0_34, %c0_35, %c0_36, %c0_37] : memref<1x4x32x128xf32, #tpu.memory_space<vmem>>, vector<1x1x32x128xf32>
    %147 = vector.shape_cast %146 : vector<1x1x32x128xf32> to vector<32x128xf32>
    %148 = vector.shape_cast %145 : vector<32x128xf32> to vector<1x1x32x128xf32>
    tpu.vector_store %arg6[%c0_34, %c0_35, %c0_36, %c0_37], %148 {strides = array<i32>} : memref<1x4x32x128xf32, #tpu.memory_space<vmem>>, vector<1x1x32x128xf32>,
    %149 = arith.mulf %55, %74 : vector<4x8x128xf32>
    %cst_38 = arith.constant dense<0.000000e+00> : vector<4x128xf32>
    %150 = vector.multi_reduction <add>, %149, %cst_38 [1] : vector<4x8x128xf32> to vector<4x128xf32>
    %151 = arith.mulf %55, %83 : vector<4x8x128xf32>
    %cst_39 = arith.constant dense<0.000000e+00> : vector<4x128xf32>
    %152 = vector.multi_reduction <add>, %151, %cst_39 [1] : vector<4x8x128xf32> to vector<4x128xf32>
    %153 = arith.mulf %55, %92 : vector<4x8x128xf32>
    %cst_40 = arith.constant dense<0.000000e+00> : vector<4x128xf32>
    %154 = vector.multi_reduction <add>, %153, %cst_40 [1] : vector<4x8x128xf32> to vector<4x128xf32>
    %155 = arith.mulf %55, %101 : vector<4x8x128xf32>
    %cst_41 = arith.constant dense<0.000000e+00> : vector<4x128xf32>
    %156 = vector.multi_reduction <add>, %155, %cst_41 [1] : vector<4x8x128xf32> to vector<4x128xf32>
    %157 = arith.maximumf %150, %152 : vector<4x128xf32>
    %158 = arith.maximumf %157, %154 : vector<4x128xf32>
    %159 = arith.maximumf %158, %156 : vector<4x128xf32>
    %160 = arith.subf %150, %159 : vector<4x128xf32>
    %161 = math.exp %160 : vector<4x128xf32>
    %162 = arith.subf %152, %159 : vector<4x128xf32>
    %163 = math.exp %162 : vector<4x128xf32>
    %164 = arith.subf %154, %159 : vector<4x128xf32>
    %165 = math.exp %164 : vector<4x128xf32>
    %166 = arith.subf %156, %159 : vector<4x128xf32>
    %167 = math.exp %166 : vector<4x128xf32>
    %168 = arith.addf %161, %163 : vector<4x128xf32>
    %169 = arith.addf %168, %165 : vector<4x128xf32>
    %170 = arith.addf %169, %167 : vector<4x128xf32>
    %171 = vector.shape_cast %161 : vector<4x128xf32> to vector<4x1x128xf32>
    %172 = vector.broadcast %171 : vector<4x1x128xf32> to vector<4x8x128xf32>
    %173 = arith.mulf %172, %76 : vector<4x8x128xf32>
    %174 = vector.shape_cast %163 : vector<4x128xf32> to vector<4x1x128xf32>
    %175 = vector.broadcast %174 : vector<4x1x128xf32> to vector<4x8x128xf32>
    %176 = arith.mulf %175, %85 : vector<4x8x128xf32>
    %177 = arith.addf %173, %176 : vector<4x8x128xf32>
    %178 = vector.shape_cast %165 : vector<4x128xf32> to vector<4x1x128xf32>
    %179 = vector.broadcast %178 : vector<4x1x128xf32> to vector<4x8x128xf32>
    %180 = arith.mulf %179, %94 : vector<4x8x128xf32>
    %181 = arith.addf %177, %180 : vector<4x8x128xf32>
    %182 = vector.shape_cast %167 : vector<4x128xf32> to vector<4x1x128xf32>
    %183 = vector.broadcast %182 : vector<4x1x128xf32> to vector<4x8x128xf32>
    %184 = arith.mulf %183, %103 : vector<4x8x128xf32>
    %185 = arith.addf %181, %184 : vector<4x8x128xf32>
    %186 = tpu.reciprocal %170 : vector<4x128xf32> -> vector<4x128xf32>
    %187 = vector.shape_cast %186 : vector<4x128xf32> to vector<4x1x128xf32>
    %188 = vector.broadcast %187 : vector<4x1x128xf32> to vector<4x8x128xf32>
    %189 = arith.mulf %185, %188 : vector<4x8x128xf32>
    %190 = vector.shape_cast %189 : vector<4x8x128xf32> to vector<32x128xf32>
    %c0_42 = arith.constant 0 : index
    %c1 = arith.constant 1 : index
    %c0_43 = arith.constant 0 : index
    %c0_44 = arith.constant 0 : index
    %191 = vector.load %arg6[%c0_42, %c1, %c0_43, %c0_44] : memref<1x4x32x128xf32, #tpu.memory_space<vmem>>, vector<1x1x32x128xf32>
    %192 = vector.shape_cast %191 : vector<1x1x32x128xf32> to vector<32x128xf32>
    %193 = vector.shape_cast %190 : vector<32x128xf32> to vector<1x1x32x128xf32>
    tpu.vector_store %arg6[%c0_42, %c1, %c0_43, %c0_44], %193 {strides = array<i32>} : memref<1x4x32x128xf32, #tpu.memory_space<vmem>>, vector<1x1x32x128xf32>,
    %194 = arith.mulf %61, %74 : vector<4x8x128xf32>
    %cst_45 = arith.constant dense<0.000000e+00> : vector<4x128xf32>
    %195 = vector.multi_reduction <add>, %194, %cst_45 [1] : vector<4x8x128xf32> to vector<4x128xf32>
    %196 = arith.mulf %61, %83 : vector<4x8x128xf32>
    %cst_46 = arith.constant dense<0.000000e+00> : vector<4x128xf32>
    %197 = vector.multi_reduction <add>, %196, %cst_46 [1] : vector<4x8x128xf32> to vector<4x128xf32>
    %198 = arith.mulf %61, %92 : vector<4x8x128xf32>
    %cst_47 = arith.constant dense<0.000000e+00> : vector<4x128xf32>
    %199 = vector.multi_reduction <add>, %198, %cst_47 [1] : vector<4x8x128xf32> to vector<4x128xf32>
    %200 = arith.mulf %61, %101 : vector<4x8x128xf32>
    %cst_48 = arith.constant dense<0.000000e+00> : vector<4x128xf32>
    %201 = vector.multi_reduction <add>, %200, %cst_48 [1] : vector<4x8x128xf32> to vector<4x128xf32>
    %202 = arith.maximumf %195, %197 : vector<4x128xf32>
    %203 = arith.maximumf %202, %199 : vector<4x128xf32>
    %204 = arith.maximumf %203, %201 : vector<4x128xf32>
    %205 = arith.subf %195, %204 : vector<4x128xf32>
    %206 = math.exp %205 : vector<4x128xf32>
    %207 = arith.subf %197, %204 : vector<4x128xf32>
    %208 = math.exp %207 : vector<4x128xf32>
    %209 = arith.subf %199, %204 : vector<4x128xf32>
    %210 = math.exp %209 : vector<4x128xf32>
    %211 = arith.subf %201, %204 : vector<4x128xf32>
    %212 = math.exp %211 : vector<4x128xf32>
    %213 = arith.addf %206, %208 : vector<4x128xf32>
    %214 = arith.addf %213, %210 : vector<4x128xf32>
    %215 = arith.addf %214, %212 : vector<4x128xf32>
    %216 = vector.shape_cast %206 : vector<4x128xf32> to vector<4x1x128xf32>
    %217 = vector.broadcast %216 : vector<4x1x128xf32> to vector<4x8x128xf32>
    %218 = arith.mulf %217, %76 : vector<4x8x128xf32>
    %219 = vector.shape_cast %208 : vector<4x128xf32> to vector<4x1x128xf32>
    %220 = vector.broadcast %219 : vector<4x1x128xf32> to vector<4x8x128xf32>
    %221 = arith.mulf %220, %85 : vector<4x8x128xf32>
    %222 = arith.addf %218, %221 : vector<4x8x128xf32>
    %223 = vector.shape_cast %210 : vector<4x128xf32> to vector<4x1x128xf32>
    %224 = vector.broadcast %223 : vector<4x1x128xf32> to vector<4x8x128xf32>
    %225 = arith.mulf %224, %94 : vector<4x8x128xf32>
    %226 = arith.addf %222, %225 : vector<4x8x128xf32>
    %227 = vector.shape_cast %212 : vector<4x128xf32> to vector<4x1x128xf32>
    %228 = vector.broadcast %227 : vector<4x1x128xf32> to vector<4x8x128xf32>
    %229 = arith.mulf %228, %103 : vector<4x8x128xf32>
    %230 = arith.addf %226, %229 : vector<4x8x128xf32>
    %231 = tpu.reciprocal %215 : vector<4x128xf32> -> vector<4x128xf32>
    %232 = vector.shape_cast %231 : vector<4x128xf32> to vector<4x1x128xf32>
    %233 = vector.broadcast %232 : vector<4x1x128xf32> to vector<4x8x128xf32>
    %234 = arith.mulf %230, %233 : vector<4x8x128xf32>
    %235 = vector.shape_cast %234 : vector<4x8x128xf32> to vector<32x128xf32>
    %c0_49 = arith.constant 0 : index
    %c2 = arith.constant 2 : index
    %c0_50 = arith.constant 0 : index
    %c0_51 = arith.constant 0 : index
    %236 = vector.load %arg6[%c0_49, %c2, %c0_50, %c0_51] : memref<1x4x32x128xf32, #tpu.memory_space<vmem>>, vector<1x1x32x128xf32>
    %237 = vector.shape_cast %236 : vector<1x1x32x128xf32> to vector<32x128xf32>
    %238 = vector.shape_cast %235 : vector<32x128xf32> to vector<1x1x32x128xf32>
    tpu.vector_store %arg6[%c0_49, %c2, %c0_50, %c0_51], %238 {strides = array<i32>} : memref<1x4x32x128xf32, #tpu.memory_space<vmem>>, vector<1x1x32x128xf32>,
    %239 = arith.mulf %67, %74 : vector<4x8x128xf32>
    %cst_52 = arith.constant dense<0.000000e+00> : vector<4x128xf32>
    %240 = vector.multi_reduction <add>, %239, %cst_52 [1] : vector<4x8x128xf32> to vector<4x128xf32>
    %241 = arith.mulf %67, %83 : vector<4x8x128xf32>
    %cst_53 = arith.constant dense<0.000000e+00> : vector<4x128xf32>
    %242 = vector.multi_reduction <add>, %241, %cst_53 [1] : vector<4x8x128xf32> to vector<4x128xf32>
    %243 = arith.mulf %67, %92 : vector<4x8x128xf32>
    %cst_54 = arith.constant dense<0.000000e+00> : vector<4x128xf32>
    %244 = vector.multi_reduction <add>, %243, %cst_54 [1] : vector<4x8x128xf32> to vector<4x128xf32>
    %245 = arith.mulf %67, %101 : vector<4x8x128xf32>
    %cst_55 = arith.constant dense<0.000000e+00> : vector<4x128xf32>
    %246 = vector.multi_reduction <add>, %245, %cst_55 [1] : vector<4x8x128xf32> to vector<4x128xf32>
    %247 = arith.maximumf %240, %242 : vector<4x128xf32>
    %248 = arith.maximumf %247, %244 : vector<4x128xf32>
    %249 = arith.maximumf %248, %246 : vector<4x128xf32>
    %250 = arith.subf %240, %249 : vector<4x128xf32>
    %251 = math.exp %250 : vector<4x128xf32>
    %252 = arith.subf %242, %249 : vector<4x128xf32>
    %253 = math.exp %252 : vector<4x128xf32>
    %254 = arith.subf %244, %249 : vector<4x128xf32>
    %255 = math.exp %254 : vector<4x128xf32>
    %256 = arith.subf %246, %249 : vector<4x128xf32>
    %257 = math.exp %256 : vector<4x128xf32>
    %258 = arith.addf %251, %253 : vector<4x128xf32>
    %259 = arith.addf %258, %255 : vector<4x128xf32>
    %260 = arith.addf %259, %257 : vector<4x128xf32>
    %261 = vector.shape_cast %251 : vector<4x128xf32> to vector<4x1x128xf32>
    %262 = vector.broadcast %261 : vector<4x1x128xf32> to vector<4x8x128xf32>
    %263 = arith.mulf %262, %76 : vector<4x8x128xf32>
    %264 = vector.shape_cast %253 : vector<4x128xf32> to vector<4x1x128xf32>
    %265 = vector.broadcast %264 : vector<4x1x128xf32> to vector<4x8x128xf32>
    %266 = arith.mulf %265, %85 : vector<4x8x128xf32>
    %267 = arith.addf %263, %266 : vector<4x8x128xf32>
    %268 = vector.shape_cast %255 : vector<4x128xf32> to vector<4x1x128xf32>
    %269 = vector.broadcast %268 : vector<4x1x128xf32> to vector<4x8x128xf32>
    %270 = arith.mulf %269, %94 : vector<4x8x128xf32>
    %271 = arith.addf %267, %270 : vector<4x8x128xf32>
    %272 = vector.shape_cast %257 : vector<4x128xf32> to vector<4x1x128xf32>
    %273 = vector.broadcast %272 : vector<4x1x128xf32> to vector<4x8x128xf32>
    %274 = arith.mulf %273, %103 : vector<4x8x128xf32>
    %275 = arith.addf %271, %274 : vector<4x8x128xf32>
    %276 = tpu.reciprocal %260 : vector<4x128xf32> -> vector<4x128xf32>
    %277 = vector.shape_cast %276 : vector<4x128xf32> to vector<4x1x128xf32>
    %278 = vector.broadcast %277 : vector<4x1x128xf32> to vector<4x8x128xf32>
    %279 = arith.mulf %275, %278 : vector<4x8x128xf32>
    %280 = vector.shape_cast %279 : vector<4x8x128xf32> to vector<32x128xf32>
    %c0_56 = arith.constant 0 : index
    %c3 = arith.constant 3 : index
    %c0_57 = arith.constant 0 : index
    %c0_58 = arith.constant 0 : index
    %281 = vector.load %arg6[%c0_56, %c3, %c0_57, %c0_58] : memref<1x4x32x128xf32, #tpu.memory_space<vmem>>, vector<1x1x32x128xf32>
    %282 = vector.shape_cast %281 : vector<1x1x32x128xf32> to vector<32x128xf32>
    %283 = vector.shape_cast %280 : vector<32x128xf32> to vector<1x1x32x128xf32>
    tpu.vector_store %arg6[%c0_56, %c3, %c0_57, %c0_58], %283 {strides = array<i32>} : memref<1x4x32x128xf32, #tpu.memory_space<vmem>>, vector<1x1x32x128xf32>,
    return
  }
  func.func @transform_0(%arg0: i32, %arg1: i32) -> (i32, i32, i32, i32) {
    %c0_i32 = arith.constant 0 : i32
    %c0_i32_0 = arith.constant 0 : i32
    %c0_i32_1 = arith.constant 0 : i32
    return %arg0, %c0_i32, %c0_i32_0, %arg1 : i32, i32, i32, i32
  }
  func.func @transform_1(%arg0: i32, %arg1: i32) -> (i32, i32, i32, i32) {
    %c0_i32 = arith.constant 0 : i32
    %c0_i32_0 = arith.constant 0 : i32
    %c0_i32_1 = arith.constant 0 : i32
    return %arg0, %c0_i32, %c0_i32_0, %arg1 : i32, i32, i32, i32
  }
  func.func @transform_2(%arg0: i32, %arg1: i32) -> (i32, i32, i32) {
    %c0_i32 = arith.constant 0 : i32
    %c0_i32_0 = arith.constant 0 : i32
    %c0_i32_1 = arith.constant 0 : i32
    return %arg0, %c0_i32, %c0_i32_0 : i32, i32, i32
  }
  func.func @transform_3(%arg0: i32, %arg1: i32) -> (i32, i32, i32) {
    %c0_i32 = arith.constant 0 : i32
    %c0_i32_0 = arith.constant 0 : i32
    %c0_i32_1 = arith.constant 0 : i32
    return %arg0, %c0_i32, %c0_i32_0 : i32, i32, i32
  }
  func.func @transform_4(%arg0: i32, %arg1: i32) -> (i32, i32, i32, i32) {
    %c0_i32 = arith.constant 0 : i32
    %c0_i32_0 = arith.constant 0 : i32
    %c0_i32_1 = arith.constant 0 : i32
    return %arg0, %c0_i32, %c0_i32_0, %arg1 : i32, i32, i32, i32
  }
}

</mosaic_0001>

<llo_original>
// kernel: tpu_custom_call.1
$region0: #{tpu_custom_call.1}
  #allocation0 [shape = 'u32[]', space=smem, size = 0x4, offset = 0x4, fixed_abs, tag = 'smem constant byte address 0x4 - core index']
  #allocation1 [shape = 'u32[72,128]{1,0:T(1,128)}', space=vmem, size = 0x9000, scoped, tag = 'internal scratch']
  %s0 = inlined_call_operand.vmem [shape: f32[4,4,32,128], index: 0, kind: input, shape index: {}]
  %s1 = inlined_call_operand.hbm [shape: f32[4,4,32,128], index: 1, kind: input, shape index: {}]
  %s2 = inlined_call_operand.vmem [shape: f32[4,96,32], index: 2, kind: input, shape index: {}]
  %s3 = inlined_call_operand.vmem [shape: f32[4,96,1], index: 3, kind: input, shape index: {}]
  %s4 = inlined_call_operand.hbm [shape: f32[4,4,32,128], index: 4, kind: output, shape index: {}]
  %s5 = sld [smem:[#allocation0]]
  $region53: #{tpu_custom_call.1} parent=0
    _
  %s7 = ssub.s32 1, %s5
  %s8 = scalar_select 0, %s7, %s5
  $region1: #{tpu_custom_call.1} parent=0
    #allocation2 [shape = 'u8[131072]{0}', space=vmem, size = 0x20000, scoped, tag = 'input window, operand 1']
    #allocation3 [shape = 's32[2]{0}', space=sflag, size = 0x8, scoped, tag = 'scoped memory for tpu_custom_call.1']
    #allocation4 [shape = 's32[2]{0}', space=sflag, size = 0x8, scoped, tag = 'scoped memory for tpu_custom_call.1']
    #allocation5 [shape = 'u8[131072]{0}', space=vmem, size = 0x20000, scoped, tag = 'output window, operand 0']
    %9 = vsyncpa [#allocation3], 0
    %s10 = scalar_lea.sflag [#allocation3], 1
    %11 = vsyncpa %s10, 0
    %12 = vsyncpa [#allocation4], 0
    %s13 = scalar_lea.sflag [#allocation4], 1
    %14 = vsyncpa %s13, 0
    loop: start=0, step=1, limit=6
    $region2: #{tpu_custom_call.1} parent=1 // loop_pre_header
      _
    $region3: #{tpu_custom_call.1} parent=1 // loop_header
      %s16 = sphi 0, %s20
      %p17 = scmp.ge.s32.totalorder %s16, 6
      %s23 = sphi 0, %s35
      %s24 = sphi 0, %s31
      %s25 = sphi 0, %s23
      %s26 = sphi 0, %s24
      %s27 = sphi 0, %s25
      %s28 = sphi 0, %s26
      %s40 = sphi 0, %s42
      %s43 = sphi 0, %s40
      %s44 = sphi 0, %s43
      %s60 = sphi 0, %s44
      %s68 = sphi 0, %s70
      %s71 = sphi 0, %s68
      %s72 = sphi 0, %s71
      %s88 = sphi 0, %s72
      %s94 = sphi 0, %s96
      %s97 = sphi 0, %s94
      %s98 = sphi 0, %s97
      %s114 = sphi 0, %s98
      %s120 = sphi 0, %s122
      %s123 = sphi 0, %s120
      %s124 = sphi 0, %s123
      %s140 = sphi 0, %s124
      %s148 = sphi 0, %s150
      %s151 = sphi 0, %s148
      %s152 = sphi 0, %s151
      %s168 = sphi 0, %s152
    $region4: #{tpu_custom_call.1} parent=1 // loop_header_branch
      %19 = sbr.rel (%p17) target = $region8
    $region5: #{tpu_custom_call.1} parent=1 // loop_body
      %s21 = ssub.s32 %s16, 1
      %s22 = ssub.s32 %s16, 2
      %s29 = sadd.s32 1, %s24
      %p30 = scmp.ge.s32.totalorder %s29, 1
      %s31 = scalar_select %p30, 0, %s29
      %s32 = sadd.s32 1, %s23
      %s33 = scalar_select %p30, %s32, %s23
      %p34 = scmp.ge.s32.totalorder %s33, 4
      %s35 = scalar_select %p34, 0, %s33
      %s36 = ssub.s32 %s23, %s35
      %s37 = ssub.s32 %s24, %s31
      %s38 = sor.u32 %s36, %s37
      %p39 = scmp.eq.s32.totalorder %s38, 0
      %s41 = sadd.s32 %s40, 1
      %s42 = scalar_select %p39, %s40, %s41
      %p45 = pneg %p39
      %p46 = scmp.eq.s32.totalorder %s16, 3
      %p47 = por %p45, %p46
      %p48 = scmp.ne.s32.totalorder %s40, %s43
      %p49 = scmp.eq.s32.totalorder %s16, 0
      %p50 = por %p48, %p49
      %p51 = scmp.ne.s32.totalorder %s40, %s43
      %p52 = scmp.eq.s32.totalorder %s21, 3
      %p53 = por %p51, %p52
      %p54 = scmp.ne.s32.totalorder %s43, %s44
      %p55 = scmp.eq.s32.totalorder %s21, 0
      %p56 = por %p54, %p55
      %p57 = scmp.ne.s32.totalorder %s43, %s44
      %p58 = scmp.eq.s32.totalorder %s22, 3
      %p59 = por %p57, %p58
      %p61 = scmp.ne.s32.totalorder %s44, %s60
      %p62 = scmp.eq.s32.totalorder %s22, 0
      %p63 = por %p61, %p62
      %s64 = ssub.s32 %s23, %s35
      %s65 = ssub.s32 %s24, %s31
      %s66 = sor.u32 %s64, %s65
      %p67 = scmp.eq.s32.totalorder %s66, 0
      %s69 = sadd.s32 %s68, 1
      %s70 = scalar_select %p67, %s68, %s69
      %p73 = pneg %p67
      %p74 = scmp.eq.s32.totalorder %s16, 3
      %p75 = por %p73, %p74
      %p76 = scmp.ne.s32.totalorder %s68, %s71
      %p77 = scmp.eq.s32.totalorder %s16, 0
      %p78 = por %p76, %p77
      %p79 = scmp.ne.s32.totalorder %s68, %s71
      %p80 = scmp.eq.s32.totalorder %s21, 3
      %p81 = por %p79, %p80
      %p82 = scmp.ne.s32.totalorder %s71, %s72
      %p83 = scmp.eq.s32.totalorder %s21, 0
      %p84 = por %p82, %p83
      %p85 = scmp.ne.s32.totalorder %s71, %s72
      %p86 = scmp.eq.s32.totalorder %s22, 3
      %p87 = por %p85, %p86
      %p89 = scmp.ne.s32.totalorder %s72, %s88
      %p90 = scmp.eq.s32.totalorder %s22, 0
      %p91 = por %p89, %p90
      %s92 = ssub.s32 %s23, %s35
      %p93 = scmp.eq.s32.totalorder %s92, 0
      %s95 = sadd.s32 %s94, 1
      %s96 = scalar_select %p93, %s94, %s95
      %p99 = pneg %p93
      %p100 = scmp.eq.s32.totalorder %s16, 3
      %p101 = por %p99, %p100
      %p102 = scmp.ne.s32.totalorder %s94, %s97
      %p103 = scmp.eq.s32.totalorder %s16, 0
      %p104 = por %p102, %p103
      %p105 = scmp.ne.s32.totalorder %s94, %s97
      %p106 = scmp.eq.s32.totalorder %s21, 3
      %p107 = por %p105, %p106
      %p108 = scmp.ne.s32.totalorder %s97, %s98
      %p109 = scmp.eq.s32.totalorder %s21, 0
      %p110 = por %p108, %p109
      %p111 = scmp.ne.s32.totalorder %s97, %s98
      %p112 = scmp.eq.s32.totalorder %s22, 3
      %p113 = por %p111, %p112
      %p115 = scmp.ne.s32.totalorder %s98, %s114
      %p116 = scmp.eq.s32.totalorder %s22, 0
      %p117 = por %p115, %p116
      %s118 = ssub.s32 %s23, %s35
      %p119 = scmp.eq.s32.totalorder %s118, 0
      %s121 = sadd.s32 %s120, 1
      %s122 = scalar_select %p119, %s120, %s121
      %p125 = pneg %p119
      %p126 = scmp.eq.s32.totalorder %s16, 3
      %p127 = por %p125, %p126
      %p128 = scmp.ne.s32.totalorder %s120, %s123
      %p129 = scmp.eq.s32.totalorder %s16, 0
      %p130 = por %p128, %p129
      %p131 = scmp.ne.s32.totalorder %s120, %s123
      %p132 = scmp.eq.s32.totalorder %s21, 3
      %p133 = por %p131, %p132
      %p134 = scmp.ne.s32.totalorder %s123, %s124
      %p135 = scmp.eq.s32.totalorder %s21, 0
      %p136 = por %p134, %p135
      %p137 = scmp.ne.s32.totalorder %s123, %s124
      %p138 = scmp.eq.s32.totalorder %s22, 3
      %p139 = por %p137, %p138
      %p141 = scmp.ne.s32.totalorder %s124, %s140
      %p142 = scmp.eq.s32.totalorder %s22, 0
      %p143 = por %p141, %p142
      %s144 = ssub.s32 %s23, %s35
      %s145 = ssub.s32 %s24, %s31
      %s146 = sor.u32 %s144, %s145
      %p147 = scmp.eq.s32.totalorder %s146, 0
      %s149 = sadd.s32 %s148, 1
      %s150 = scalar_select %p147, %s148, %s149
      %p153 = pneg %p147
      %p154 = scmp.eq.s32.totalorder %s16, 3
      %p155 = por %p153, %p154
      %p156 = scmp.ne.s32.totalorder %s148, %s151
      %p157 = scmp.eq.s32.totalorder %s16, 0
      %p158 = por %p156, %p157
      %p159 = scmp.ne.s32.totalorder %s148, %s151
      %p160 = scmp.eq.s32.totalorder %s21, 3
      %p161 = por %p159, %p160
      %p162 = scmp.ne.s32.totalorder %s151, %s152
      %p163 = scmp.eq.s32.totalorder %s21, 0
      %p164 = por %p162, %p163
      %p165 = scmp.ne.s32.totalorder %s151, %s152
      %p166 = scmp.eq.s32.totalorder %s22, 3
      %p167 = por %p165, %p166
      %p169 = scmp.ne.s32.totalorder %s152, %s168
      %p170 = scmp.eq.s32.totalorder %s22, 0
      %p171 = por %p169, %p170
      %p172 = scmp.le.s32.totalorder 1, %s16
      %p173 = scmp.lt.s32.totalorder %s16, 5
      %p174 = pnand %p172, %p173
      %p175 = pneg %p174
      // Predicated region
      $region9: #{tpu_custom_call.1} parent=5 // pred_check
        _
      $region10: #{tpu_custom_call.1} parent=5 // pred_check_branch
        %177 = sbr.rel (%p174) target = $region12
      $region11: #{tpu_custom_call.1} parent=5 // pred_region
        %s178 = ssub.s32 %s16, 1
      $region12: #{tpu_custom_call.1} parent=5 // pred_fallthru
        _
      %p179 = scmp.lt.s32.totalorder %s16, 4
      // Predicated region
      $region13: #{tpu_custom_call.1} parent=5 // pred_check
        %p180 = pneg %p179
      $region14: #{tpu_custom_call.1} parent=5 // pred_check_branch
        %182 = sbr.rel (%p180) target = $region16
      $region15: #{tpu_custom_call.1} parent=5 // pred_region
        // Predicated region
        $region17: #{tpu_custom_call.1} parent=15 // pred_check
          %p183 = pneg %p50
        $region18: #{tpu_custom_call.1} parent=15 // pred_check_branch
          %185 = sbr.rel (%p183) target = $region20
        $region19: #{tpu_custom_call.1} parent=15 // pred_region
          %p186 = scmp.lt.s32.totalorder %s23, 3
          %s187 = scalar_select %p186, %s23, 3
          %p188 = scmp.lt.s32.totalorder %s24, 0
          %s189 = scalar_select %p188, %s24, 0
          %s190 = smul.addr %s187, 16
          %s191 = sadd.s32 %s189, %s190
          %s192 = smul.addr %s191, 8
          %s193 = scalar_lea.vmem %s0, %s192
        $region20: #{tpu_custom_call.1} parent=15 // pred_fallthru
          _
        // Predicated region
        $region21: #{tpu_custom_call.1} parent=15 // pred_check
          %p194 = pneg %p78
        $region22: #{tpu_custom_call.1} parent=15 // pred_check_branch
          %196 = sbr.rel (%p194) target = $region24
        $region23: #{tpu_custom_call.1} parent=15 // pred_region
          %s197 = sand.u32 %s68, 1
          %s198 = scalar_lea.sflag [#allocation3], %s197
          %s199 = sand.u32 %s68, 1
          %s200 = smul.addr %s199, 128
          %s201 = scalar_lea.vmem [#allocation2], %s200
          %203 = vsyncadd %s198, 0
          %s204 = smul.addr %s23, 16
          %s205 = sadd.s32 %s24, %s204
          %s206 = smul.addr %s205, 8
          %s207 = scalar_lea.hbm %s1, %s206
          %s208 = sshll.u32 %s207, 4
          %s209 = int_to_ptr.hbm [resolvable:$true] %s208
          %s210 = sshll.u32 %s201, 4
          %s211 = int_to_ptr.vmem [resolvable:$true] %s210
          %216 = dma.hbm_to_vmem [thread:$0]  %s209, 2048, %s211, %s198, 128, 128, 8
        $region24: #{tpu_custom_call.1} parent=15 // pred_fallthru
          _
        // Predicated region
        $region25: #{tpu_custom_call.1} parent=15 // pred_check
          %p217 = pneg %p104
        $region26: #{tpu_custom_call.1} parent=15 // pred_check_branch
          %219 = sbr.rel (%p217) target = $region28
        $region27: #{tpu_custom_call.1} parent=15 // pred_region
          %p220 = scmp.lt.s32.totalorder %s23, 3
          %s221 = scalar_select %p220, %s23, 3
          %s222 = smul.addr %s221, 12
          %s223 = smul.addr %s222, 8
          %s224 = scalar_lea.vmem %s2, %s223
        $region28: #{tpu_custom_call.1} parent=15 // pred_fallthru
          _
        // Predicated region
        $region29: #{tpu_custom_call.1} parent=15 // pred_check
          %p225 = pneg %p130
        $region30: #{tpu_custom_call.1} parent=15 // pred_check_branch
          %227 = sbr.rel (%p225) target = $region32
        $region31: #{tpu_custom_call.1} parent=15 // pred_region
          %p228 = scmp.lt.s32.totalorder %s23, 3
          %s229 = scalar_select %p228, %s23, 3
          %s230 = smul.addr %s229, 12
          %s231 = smul.addr %s230, 8
          %s232 = scalar_lea.vmem %s3, %s231
        $region32: #{tpu_custom_call.1} parent=15 // pred_fallthru
          _
      $region16: #{tpu_custom_call.1} parent=5 // pred_fallthru
        _
      %p233 = scmp.le.s32.totalorder 1, %s16
      %p234 = scmp.lt.s32.totalorder %s16, 5
      %p235 = pnand %p233, %p234
      %p236 = pneg %p235
      // Predicated region
      $region33: #{tpu_custom_call.1} parent=5 // pred_check
        _
      $region34: #{tpu_custom_call.1} parent=5 // pred_check_branch
        %238 = sbr.rel (%p235) target = $region36
      $region35: #{tpu_custom_call.1} parent=5 // pred_region
        %s239 = ssub.s32 %s16, 1
        %s240 = sand.u32 %s71, 1
        %s241 = scalar_lea.sflag [#allocation3], %s240
        %s242 = sand.u32 %s71, 1
        %s243 = smul.addr %s242, 128
        %s244 = scalar_lea.vmem [#allocation2], %s243
        // Predicated region
        $region37: #{tpu_custom_call.1} parent=35 // pred_check
          %p245 = pneg %p84
        $region38: #{tpu_custom_call.1} parent=35 // pred_check_branch
          %247 = sbr.rel (%p245) target = $region40
        $region39: #{tpu_custom_call.1} parent=35 // pred_region
          %249 = dma.done %s241, 2048
        $region40: #{tpu_custom_call.1} parent=35 // pred_fallthru
          _
        %p250 = scmp.lt.s32.totalorder %s25, 3
        %s251 = scalar_select %p250, %s25, 3
        %p252 = scmp.lt.s32.totalorder %s26, 0
        %s253 = scalar_select %p252, %s26, 0
        %s254 = smul.addr %s251, 16
        %s255 = sadd.s32 %s253, %s254
        %s256 = smul.addr %s255, 8
        %s257 = scalar_lea.vmem %s0, %s256
        %p258 = pneg %p56
        %p259 = pneg %p53
        %s260 = sand.u32 %s71, 1
        %s261 = scalar_lea.sflag [#allocation3], %s260
        %s262 = sand.u32 %s71, 1
        %s263 = smul.addr %s262, 128
        %s264 = scalar_lea.vmem [#allocation2], %s263
        %p265 = pneg %p84
        %p266 = pneg %p81
        %p267 = scmp.lt.s32.totalorder %s25, 3
        %s268 = scalar_select %p267, %s25, 3
        %s269 = smul.addr %s268, 12
        %s270 = smul.addr %s269, 8
        %s271 = scalar_lea.vmem %s2, %s270
        %p272 = pneg %p110
        %p273 = pneg %p107
        %p274 = scmp.lt.s32.totalorder %s25, 3
        %s275 = scalar_select %p274, %s25, 3
        %s276 = smul.addr %s275, 12
        %s277 = smul.addr %s276, 8
        %s278 = scalar_lea.vmem %s3, %s277
        %p279 = pneg %p136
        %p280 = pneg %p133
        %p281 = pneg %p164
        %p282 = pneg %p161
        %s283 = sand.u32 %s151, 1
        %s284 = scalar_lea.sflag [#allocation4], %s283
        %s285 = sand.u32 %s151, 1
        %s286 = smul.addr %s285, 128
        %s287 = scalar_lea.vmem [#allocation5], %s286
        %p288 = scmp.lt.s32.totalorder %s25, 3
        %s289 = scalar_select %p288, %s25, 3
        %p290 = scmp.lt.s32.totalorder %s26, 0
        %s291 = scalar_select %p290, %s26, 0
        %s292 = smul.addr %s289, 16
        %s293 = sadd.s32 %s291, %s292
        %s294 = smul.addr %s293, 8
        %s295 = scalar_lea.vmem %s0, %s294
        %p296 = scmp.lt.s32.totalorder %s25, 3
        %s297 = scalar_select %p296, %s25, 3
        %s298 = smul.addr %s297, 12
        %s299 = smul.addr %s298, 8
        %s300 = scalar_lea.vmem %s2, %s299
        %p301 = scmp.lt.s32.totalorder %s25, 3
        %s302 = scalar_select %p301, %s25, 3
        %s303 = smul.addr %s302, 12
        %s304 = smul.addr %s303, 8
        %s305 = scalar_lea.vmem %s3, %s304
        %v306 = vld [vmem:[%s300] sm:$0xff]
        %v307 = vld [vmem:[%s300 + $0x8] sm:$0xff]
        %v308 = vld [vmem:[%s300 + $0x10] sm:$0xff]
        %v309 = vld [vmem:[%s300 + $0x18] sm:$0xff]
        %v310 = vld [vmem:[%s300 + $0x20] sm:$0xff]
        %v311 = vld [vmem:[%s300 + $0x28] sm:$0xff]
        %v312 = vld [vmem:[%s300 + $0x30] sm:$0xff]
        %v313 = vld [vmem:[%s300 + $0x38] sm:$0xff]
        %v314 = vld [vmem:[%s300 + $0x40] sm:$0xff]
        %v315 = vld [vmem:[%s300 + $0x48] sm:$0xff]
        %v316 = vld [vmem:[%s300 + $0x50] sm:$0xff]
        %v317 = vld [vmem:[%s300 + $0x58] sm:$0xff]
        %v318 = vld [vmem:[%s305] sm:$0xff]
        %v319 = vld [vmem:[%s305 + $0x8] sm:$0xff]
        %v320 = vld [vmem:[%s305 + $0x10] sm:$0xff]
        %v321 = vld [vmem:[%s305 + $0x18] sm:$0xff]
        %v322 = vld [vmem:[%s305 + $0x20] sm:$0xff]
        %v323 = vld [vmem:[%s305 + $0x28] sm:$0xff]
        %v324 = vld [vmem:[%s305 + $0x30] sm:$0xff]
        %v325 = vld [vmem:[%s305 + $0x38] sm:$0xff]
        %v326 = vld [vmem:[%s305 + $0x40] sm:$0xff]
        %v327 = vld [vmem:[%s305 + $0x48] sm:$0xff]
        %v328 = vld [vmem:[%s305 + $0x50] sm:$0xff]
        %v329 = vld [vmem:[%s305 + $0x58] sm:$0xff]
        %v330 = vld [vmem:[%s295] sm:$0xff]
        %v331 = vld [vmem:[%s295 + $0x8] sm:$0xff]
        %v332 = vld [vmem:[%s295 + $0x10] sm:$0xff]
        %v333 = vld [vmem:[%s295 + $0x18] sm:$0xff]
        %v334 = vld [vmem:[%s295 + $0x20] sm:$0xff]
        %v335 = vld [vmem:[%s295 + $0x28] sm:$0xff]
        %v336 = vld [vmem:[%s295 + $0x30] sm:$0xff]
        %v337 = vld [vmem:[%s295 + $0x38] sm:$0xff]
        %v338 = vld [vmem:[%s295 + $0x40] sm:$0xff]
        %v339 = vld [vmem:[%s295 + $0x48] sm:$0xff]
        %v340 = vld [vmem:[%s295 + $0x50] sm:$0xff]
        %v341 = vld [vmem:[%s295 + $0x58] sm:$0xff]
        %v342 = vld [vmem:[%s295 + $0x60] sm:$0xff]
        %v343 = vld [vmem:[%s295 + $0x68] sm:$0xff]
        %v344 = vld [vmem:[%s295 + $0x70] sm:$0xff]
        %v345 = vld [vmem:[%s295 + $0x78] sm:$0xff]
        %v346 = vadd.f32 %v330, %v331
        %v347 = vadd.f32 %v346, %v332
        %v348 = vadd.f32 %v347, %v333
        %v349 = vrot.slane %v348, 4
        %v350 = vadd.f32 %v348, %v349
        %v351 = vrot.slane %v350, 2
        %v352 = vadd.f32 %v350, %v351
        %v353 = vrot.slane %v352, 1
        %v354 = vadd.f32 %v352, %v353
        %v355 = vadd.f32 %v334, %v335
        %v356 = vadd.f32 %v355, %v336
        %v357 = vadd.f32 %v356, %v337
        %v358 = vrot.slane %v357, 4
        %v359 = vadd.f32 %v357, %v358
        %v360 = vrot.slane %v359, 2
        %v361 = vadd.f32 %v359, %v360
        %v362 = vrot.slane %v361, 1
        %v363 = vadd.f32 %v361, %v362
        %v364 = vadd.f32 %v338, %v339
        %v365 = vadd.f32 %v364, %v340
        %v366 = vadd.f32 %v365, %v341
        %v367 = vrot.slane %v366, 4
        %v368 = vadd.f32 %v366, %v367
        %v369 = vrot.slane %v368, 2
        %v370 = vadd.f32 %v368, %v369
        %v371 = vrot.slane %v370, 1
        %v372 = vadd.f32 %v370, %v371
        %v373 = vadd.f32 %v342, %v343
        %v374 = vadd.f32 %v373, %v344
        %v375 = vadd.f32 %v374, %v345
        %v376 = vrot.slane %v375, 4
        %v377 = vadd.f32 %v375, %v376
        %v378 = vrot.slane %v377, 2
        %v379 = vadd.f32 %v377, %v378
        %v380 = vrot.slane %v379, 1
        %v381 = vadd.f32 %v379, %v380
        %v382 = vrcp.pop 32.0
        %v383 = vmul.f32 32.0, %v382
        %v384 = vsub.f32 1.0, %v383
        %v385 = vmul.f32 %v382, %v384
        %v386 = vadd.f32 %v382, %v385
        %vm387 = vweird.f32 %v382
        %v388 = vsel %vm387, %v382, %v386
        %v389 = vmul.f32 %v354, %v388
        %v390 = vmul.f32 %v363, %v388
        %v391 = vmul.f32 %v372, %v388
        %v392 = vmul.f32 %v381, %v388
        %v393 = vsub.f32 %v330, %v389
        %v394 = vsub.f32 %v331, %v389
        %v395 = vsub.f32 %v332, %v389
        %v396 = vsub.f32 %v333, %v389
        %v397 = vsub.f32 %v334, %v390
        %v398 = vsub.f32 %v335, %v390
        %v399 = vsub.f32 %v336, %v390
        %v400 = vsub.f32 %v337, %v390
        %v401 = vsub.f32 %v338, %v391
        %v402 = vsub.f32 %v339, %v391
        %v403 = vsub.f32 %v340, %v391
        %v404 = vsub.f32 %v341, %v391
        %v405 = vsub.f32 %v342, %v392
        %v406 = vsub.f32 %v343, %v392
        %v407 = vsub.f32 %v344, %v392
        %v408 = vsub.f32 %v345, %v392
        %v409 = vmul.f32 %v393, %v393
        %v410 = vmul.f32 %v394, %v394
        %v411 = vmul.f32 %v395, %v395
        %v412 = vmul.f32 %v396, %v396
        %v413 = vmul.f32 %v397, %v397
        %v414 = vmul.f32 %v398, %v398
        %v415 = vmul.f32 %v399, %v399
        %v416 = vmul.f32 %v400, %v400
        %v417 = vmul.f32 %v401, %v401
        %v418 = vmul.f32 %v402, %v402
        %v419 = vmul.f32 %v403, %v403
        %v420 = vmul.f32 %v404, %v404
        %v421 = vmul.f32 %v405, %v405
        %v422 = vmul.f32 %v406, %v406
        %v423 = vmul.f32 %v407, %v407
        %v424 = vmul.f32 %v408, %v408
        %v425 = vadd.f32 %v409, %v410
        %v426 = vadd.f32 %v425, %v411
        %v427 = vadd.f32 %v426, %v412
        %v428 = vrot.slane %v427, 4
        %v429 = vadd.f32 %v427, %v428
        %v430 = vrot.slane %v429, 2
        %v431 = vadd.f32 %v429, %v430
        %v432 = vrot.slane %v431, 1
        %v433 = vadd.f32 %v431, %v432
        %v434 = vadd.f32 %v413, %v414
        %v435 = vadd.f32 %v434, %v415
        %v436 = vadd.f32 %v435, %v416
        %v437 = vrot.slane %v436, 4
        %v438 = vadd.f32 %v436, %v437
        %v439 = vrot.slane %v438, 2
        %v440 = vadd.f32 %v438, %v439
        %v441 = vrot.slane %v440, 1
        %v442 = vadd.f32 %v440, %v441
        %v443 = vadd.f32 %v417, %v418
        %v444 = vadd.f32 %v443, %v419
        %v445 = vadd.f32 %v444, %v420
        %v446 = vrot.slane %v445, 4
        %v447 = vadd.f32 %v445, %v446
        %v448 = vrot.slane %v447, 2
        %v449 = vadd.f32 %v447, %v448
        %v450 = vrot.slane %v449, 1
        %v451 = vadd.f32 %v449, %v450
        %v452 = vadd.f32 %v421, %v422
        %v453 = vadd.f32 %v452, %v423
        %v454 = vadd.f32 %v453, %v424
        %v455 = vrot.slane %v454, 4
        %v456 = vadd.f32 %v454, %v455
        %v457 = vrot.slane %v456, 2
        %v458 = vadd.f32 %v456, %v457
        %v459 = vrot.slane %v458, 1
        %v460 = vadd.f32 %v458, %v459
        %v461 = vmul.f32 %v433, 0.032258064
        %v462 = vmul.f32 %v442, 0.032258064
        %v463 = vmul.f32 %v451, 0.032258064
        %v464 = vmul.f32 %v460, 0.032258064
        %v465 = vadd.f32 %v461, 1e-05
        %v466 = vadd.f32 %v462, 1e-05
        %v467 = vadd.f32 %v463, 1e-05
        %v468 = vadd.f32 %v464, 1e-05
        %v469 = vrsqrt.pop %v465
        %v470 = vmul.f32 %v469, %v465
        %v471 = vmul.f32 %v470, %v469
        %v472 = vmul.f32 0.5, %v471
        %v473 = vsub.f32 1.5, %v472
        %v474 = vmul.f32 %v469, %v473
        %vm475 = vweird.f32 %v465
        %vm476 = vweird.f32 %v469
        %vm477 = vmor %vm475, %vm476
        %v478 = vsel %vm477, %v469, %v474
        %v479 = vrsqrt.pop %v466
        %v480 = vmul.f32 %v479, %v466
        %v481 = vmul.f32 %v480, %v479
        %v482 = vmul.f32 0.5, %v481
        %v483 = vsub.f32 1.5, %v482
        %v484 = vmul.f32 %v479, %v483
        %vm485 = vweird.f32 %v466
        %vm486 = vweird.f32 %v479
        %vm487 = vmor %vm485, %vm486
        %v488 = vsel %vm487, %v479, %v484
        %v489 = vrsqrt.pop %v467
        %v490 = vmul.f32 %v489, %v467
        %v491 = vmul.f32 %v490, %v489
        %v492 = vmul.f32 0.5, %v491
        %v493 = vsub.f32 1.5, %v492
        %v494 = vmul.f32 %v489, %v493
        %vm495 = vweird.f32 %v467
        %vm496 = vweird.f32 %v489
        %vm497 = vmor %vm495, %vm496
        %v498 = vsel %vm497, %v489, %v494
        %v499 = vrsqrt.pop %v468
        %v500 = vmul.f32 %v499, %v468
        %v501 = vmul.f32 %v500, %v499
        %v502 = vmul.f32 0.5, %v501
        %v503 = vsub.f32 1.5, %v502
        %v504 = vmul.f32 %v499, %v503
        %vm505 = vweird.f32 %v468
        %vm506 = vweird.f32 %v499
        %vm507 = vmor %vm505, %vm506
        %v508 = vsel %vm507, %v499, %v504
        %v509 = vmul.f32 %v393, %v478
        %v510 = vmul.f32 %v394, %v478
        %v511 = vmul.f32 %v395, %v478
        %v512 = vmul.f32 %v396, %v478
        %v513 = vmul.f32 %v397, %v488
        %v514 = vmul.f32 %v398, %v488
        %v515 = vmul.f32 %v399, %v488
        %v516 = vmul.f32 %v400, %v488
        %v517 = vmul.f32 %v401, %v498
        %v518 = vmul.f32 %v402, %v498
        %v519 = vmul.f32 %v403, %v498
        %v520 = vmul.f32 %v404, %v498
        %v521 = vmul.f32 %v405, %v508
        %v522 = vmul.f32 %v406, %v508
        %v523 = vmul.f32 %v407, %v508
        %v524 = vmul.f32 %v408, %v508
        %v525 = vld [vmem:[%s244] sm:$0xff]
        %v526 = vld [vmem:[%s244 + $0x8] sm:$0xff]
        %v527 = vld [vmem:[%s244 + $0x10] sm:$0xff]
        %v528 = vld [vmem:[%s244 + $0x18] sm:$0xff]
        %v529 = vld [vmem:[%s244 + $0x20] sm:$0xff]
        %v530 = vld [vmem:[%s244 + $0x28] sm:$0xff]
        %v531 = vld [vmem:[%s244 + $0x30] sm:$0xff]
        %v532 = vld [vmem:[%s244 + $0x38] sm:$0xff]
        %v533 = vld [vmem:[%s244 + $0x40] sm:$0xff]
        %v534 = vld [vmem:[%s244 + $0x48] sm:$0xff]
        %v535 = vld [vmem:[%s244 + $0x50] sm:$0xff]
        %v536 = vld [vmem:[%s244 + $0x58] sm:$0xff]
        %v537 = vld [vmem:[%s244 + $0x60] sm:$0xff]
        %v538 = vld [vmem:[%s244 + $0x68] sm:$0xff]
        %v539 = vld [vmem:[%s244 + $0x70] sm:$0xff]
        %v540 = vld [vmem:[%s244 + $0x78] sm:$0xff]
        %v541 = vadd.f32 %v525, %v526
        %v542 = vadd.f32 %v541, %v527
        %v543 = vadd.f32 %v542, %v528
        %v544 = vrot.slane %v543, 4
        %v545 = vadd.f32 %v543, %v544
        %v546 = vrot.slane %v545, 2
        %v547 = vadd.f32 %v545, %v546
        %v548 = vrot.slane %v547, 1
        %v549 = vadd.f32 %v547, %v548
        %v550 = vadd.f32 %v529, %v530
        %v551 = vadd.f32 %v550, %v531
        %v552 = vadd.f32 %v551, %v532
        %v553 = vrot.slane %v552, 4
        %v554 = vadd.f32 %v552, %v553
        %v555 = vrot.slane %v554, 2
        %v556 = vadd.f32 %v554, %v555
        %v557 = vrot.slane %v556, 1
        %v558 = vadd.f32 %v556, %v557
        %v559 = vadd.f32 %v533, %v534
        %v560 = vadd.f32 %v559, %v535
        %v561 = vadd.f32 %v560, %v536
        %v562 = vrot.slane %v561, 4
        %v563 = vadd.f32 %v561, %v562
        %v564 = vrot.slane %v563, 2
        %v565 = vadd.f32 %v563, %v564
        %v566 = vrot.slane %v565, 1
        %v567 = vadd.f32 %v565, %v566
        %v568 = vadd.f32 %v537, %v538
        %v569 = vadd.f32 %v568, %v539
        %v570 = vadd.f32 %v569, %v540
        %v571 = vrot.slane %v570, 4
        %v572 = vadd.f32 %v570, %v571
        %v573 = vrot.slane %v572, 2
        %v574 = vadd.f32 %v572, %v573
        %v575 = vrot.slane %v574, 1
        %v576 = vadd.f32 %v574, %v575
        %v577 = vmul.f32 %v549, %v388
        %v578 = vmul.f32 %v558, %v388
        %v579 = vmul.f32 %v567, %v388
        %v580 = vmul.f32 %v576, %v388
        %v581 = vsub.f32 %v525, %v577
        %v582 = vsub.f32 %v526, %v577
        %v583 = vsub.f32 %v527, %v577
        %v584 = vsub.f32 %v528, %v577
        %v585 = vsub.f32 %v529, %v578
        %v586 = vsub.f32 %v530, %v578
        %v587 = vsub.f32 %v531, %v578
        %v588 = vsub.f32 %v532, %v578
        %v589 = vsub.f32 %v533, %v579
        %v590 = vsub.f32 %v534, %v579
        %v591 = vsub.f32 %v535, %v579
        %v592 = vsub.f32 %v536, %v579
        %v593 = vsub.f32 %v537, %v580
        %v594 = vsub.f32 %v538, %v580
        %v595 = vsub.f32 %v539, %v580
        %v596 = vsub.f32 %v540, %v580
        %v597 = vmul.f32 %v581, %v581
        %v598 = vmul.f32 %v582, %v582
        %v599 = vmul.f32 %v583, %v583
        %v600 = vmul.f32 %v584, %v584
        %v601 = vmul.f32 %v585, %v585
        %v602 = vmul.f32 %v586, %v586
        %v603 = vmul.f32 %v587, %v587
        %v604 = vmul.f32 %v588, %v588
        %v605 = vmul.f32 %v589, %v589
        %v606 = vmul.f32 %v590, %v590
        %v607 = vmul.f32 %v591, %v591
        %v608 = vmul.f32 %v592, %v592
        %v609 = vmul.f32 %v593, %v593
        %v610 = vmul.f32 %v594, %v594
        %v611 = vmul.f32 %v595, %v595
        %v612 = vmul.f32 %v596, %v596
        %v613 = vadd.f32 %v597, %v598
        %v614 = vadd.f32 %v613, %v599
        %v615 = vadd.f32 %v614, %v600
        %v616 = vrot.slane %v615, 4
        %v617 = vadd.f32 %v615, %v616
        %v618 = vrot.slane %v617, 2
        %v619 = vadd.f32 %v617, %v618
        %v620 = vrot.slane %v619, 1
        %v621 = vadd.f32 %v619, %v620
        %v622 = vadd.f32 %v601, %v602
        %v623 = vadd.f32 %v622, %v603
        %v624 = vadd.f32 %v623, %v604
        %v625 = vrot.slane %v624, 4
        %v626 = vadd.f32 %v624, %v625
        %v627 = vrot.slane %v626, 2
        %v628 = vadd.f32 %v626, %v627
        %v629 = vrot.slane %v628, 1
        %v630 = vadd.f32 %v628, %v629
        %v631 = vadd.f32 %v605, %v606
        %v632 = vadd.f32 %v631, %v607
        %v633 = vadd.f32 %v632, %v608
        %v634 = vrot.slane %v633, 4
        %v635 = vadd.f32 %v633, %v634
        %v636 = vrot.slane %v635, 2
        %v637 = vadd.f32 %v635, %v636
        %v638 = vrot.slane %v637, 1
        %v639 = vadd.f32 %v637, %v638
        %v640 = vadd.f32 %v609, %v610
        %v641 = vadd.f32 %v640, %v611
        %v642 = vadd.f32 %v641, %v612
        %v643 = vrot.slane %v642, 4
        %v644 = vadd.f32 %v642, %v643
        %v645 = vrot.slane %v644, 2
        %v646 = vadd.f32 %v644, %v645
        %v647 = vrot.slane %v646, 1
        %v648 = vadd.f32 %v646, %v647
        %v649 = vmul.f32 %v621, 0.032258064
        %v650 = vmul.f32 %v630, 0.032258064
        %v651 = vmul.f32 %v639, 0.032258064
        %v652 = vmul.f32 %v648, 0.032258064
        %v653 = vadd.f32 %v649, 1e-05
        %v654 = vadd.f32 %v650, 1e-05
        %v655 = vadd.f32 %v651, 1e-05
        %v656 = vadd.f32 %v652, 1e-05
        %v657 = vrsqrt.pop %v653
        %v658 = vmul.f32 %v657, %v653
        %v659 = vmul.f32 %v658, %v657
        %v660 = vmul.f32 0.5, %v659
        %v661 = vsub.f32 1.5, %v660
        %v662 = vmul.f32 %v657, %v661
        %vm663 = vweird.f32 %v653
        %vm664 = vweird.f32 %v657
        %vm665 = vmor %vm663, %vm664
        %v666 = vsel %vm665, %v657, %v662
        %v667 = vrsqrt.pop %v654
        %v668 = vmul.f32 %v667, %v654
        %v669 = vmul.f32 %v668, %v667
        %v670 = vmul.f32 0.5, %v669
        %v671 = vsub.f32 1.5, %v670
        %v672 = vmul.f32 %v667, %v671
        %vm673 = vweird.f32 %v654
        %vm674 = vweird.f32 %v667
        %vm675 = vmor %vm673, %vm674
        %v676 = vsel %vm675, %v667, %v672
        %v677 = vrsqrt.pop %v655
        %v678 = vmul.f32 %v677, %v655
        %v679 = vmul.f32 %v678, %v677
        %v680 = vmul.f32 0.5, %v679
        %v681 = vsub.f32 1.5, %v680
        %v682 = vmul.f32 %v677, %v681
        %vm683 = vweird.f32 %v655
        %vm684 = vweird.f32 %v677
        %vm685 = vmor %vm683, %vm684
        %v686 = vsel %vm685, %v677, %v682
        %v687 = vrsqrt.pop %v656
        %v688 = vmul.f32 %v687, %v656
        %v689 = vmul.f32 %v688, %v687
        %v690 = vmul.f32 0.5, %v689
        %v691 = vsub.f32 1.5, %v690
        %v692 = vmul.f32 %v687, %v691
        %vm693 = vweird.f32 %v656
        %vm694 = vweird.f32 %v687
        %vm695 = vmor %vm693, %vm694
        %v696 = vsel %vm695, %v687, %v692
        %v697 = vmul.f32 %v581, %v666
        %v698 = vmul.f32 %v582, %v666
        %v699 = vmul.f32 %v583, %v666
        %v700 = vmul.f32 %v584, %v666
        %v701 = vmul.f32 %v585, %v676
        %v702 = vmul.f32 %v586, %v676
        %v703 = vmul.f32 %v587, %v676
        %v704 = vmul.f32 %v588, %v676
        %v705 = vmul.f32 %v589, %v686
        %v706 = vmul.f32 %v590, %v686
        %v707 = vmul.f32 %v591, %v686
        %v708 = vmul.f32 %v592, %v686
        %v709 = vmul.f32 %v593, %v696
        %v710 = vmul.f32 %v594, %v696
        %v711 = vmul.f32 %v595, %v696
        %v712 = vmul.f32 %v596, %v696
        %714 = vset.pattern.permute.xlu0 0
        %715 = vperm.xlu0 %714, %v318
        %v716 = vpop.permute.xlu0 %715
        %719 = vset.pattern.permute.xlu0 0
        %720 = vperm.xlu0 %719, %v319
        %v721 = vpop.permute.xlu0 %720
        %724 = vset.pattern.permute.xlu0 0
        %725 = vperm.xlu0 %724, %v320
        %v726 = vpop.permute.xlu0 %725
        %729 = vset.pattern.permute.xlu0 0
        %730 = vperm.xlu0 %729, %v321
        %v731 = vpop.permute.xlu0 %730
        %vm733 = vcmask 261120
        %v735 = vsel %vm733, %v306, 0
        %v738 = vsel %vm733, %v307, 0
        %v741 = vsel %vm733, %v308, 0
        %v744 = vsel %vm733, %v309, 0
        %746 = vmatpush.msra.mxu0 0.0
        %747 = vmatpush.msra.mxu0 0.0
        %748 = vmatpush.msra.mxu0 0.0
        %749 = vmatpush.msra.mxu0 0.0
        %750 = vmatpush.msra.mxu0 0.0
        %751 = vmatpush.msra.mxu0 0.0
        %752 = vmatpush.msra.mxu0 0.0
        %753 = vmatpush.msra.mxu0 0.0
        %754 = vmatpush.msra.mxu0 0.0
        %755 = vmatpush.msra.mxu0 0.0
        %756 = vmatpush.msra.mxu0 0.0
        %757 = vmatpush.msra.mxu0 0.0
        %758 = vmatpush.msra.mxu0 %v512
        %759 = vmatpush.msra.mxu0 %v511
        %760 = vmatpush.msra.mxu0 %v510
        %761 = vmatpush.msra.mxu0 %v509
        %762 = vmatmul.f32.gmra.mxu0 %v735
        %v763 = vpop.f32.mrf.mxu0
        %v764 = vadd.f32 %v716, %v763
        %765 = vmatmul.f32.gmra.mxu0 %v738
        %v766 = vpop.f32.mrf.mxu0
        %v767 = vadd.f32 %v721, %v766
        %768 = vmatmul.f32.gmra.mxu0 %v741
        %v769 = vpop.f32.mrf.mxu0
        %v770 = vadd.f32 %v726, %v769
        %771 = vmatmul.f32.gmra.mxu0 %v744
        %v772 = vpop.f32.mrf.mxu0
        %v773 = vadd.f32 %v731, %v772
        %774 = vdwg.mxu0
        %775 = vmatpush.msra.mxu0 0.0
        %776 = vmatpush.msra.mxu0 0.0
        %777 = vmatpush.msra.mxu0 0.0
        %778 = vmatpush.msra.mxu0 0.0
        %779 = vmatpush.msra.mxu0 0.0
        %780 = vmatpush.msra.mxu0 0.0
        %781 = vmatpush.msra.mxu0 0.0
        %782 = vmatpush.msra.mxu0 0.0
        %783 = vmatpush.msra.mxu0 0.0
        %784 = vmatpush.msra.mxu0 0.0
        %785 = vmatpush.msra.mxu0 0.0
        %786 = vmatpush.msra.mxu0 0.0
        %787 = vmatpush.msra.mxu0 %v516
        %788 = vmatpush.msra.mxu0 %v515
        %789 = vmatpush.msra.mxu0 %v514
        %790 = vmatpush.msra.mxu0 %v513
        %791 = vmatmul.f32.gmra.mxu0 %v735
        %v792 = vpop.f32.mrf.mxu0
        %v793 = vadd.f32 %v716, %v792
        %794 = vmatmul.f32.gmra.mxu0 %v738
        %v795 = vpop.f32.mrf.mxu0
        %v796 = vadd.f32 %v721, %v795
        %797 = vmatmul.f32.gmra.mxu0 %v741
        %v798 = vpop.f32.mrf.mxu0
        %v799 = vadd.f32 %v726, %v798
        %800 = vmatmul.f32.gmra.mxu0 %v744
        %v801 = vpop.f32.mrf.mxu0
        %v802 = vadd.f32 %v731, %v801
        %803 = vdwg.mxu0
        %804 = vmatpush.msra.mxu0 0.0
        %805 = vmatpush.msra.mxu0 0.0
        %806 = vmatpush.msra.mxu0 0.0
        %807 = vmatpush.msra.mxu0 0.0
        %808 = vmatpush.msra.mxu0 0.0
        %809 = vmatpush.msra.mxu0 0.0
        %810 = vmatpush.msra.mxu0 0.0
        %811 = vmatpush.msra.mxu0 0.0
        %812 = vmatpush.msra.mxu0 0.0
        %813 = vmatpush.msra.mxu0 0.0
        %814 = vmatpush.msra.mxu0 0.0
        %815 = vmatpush.msra.mxu0 0.0
        %816 = vmatpush.msra.mxu0 %v520
        %817 = vmatpush.msra.mxu0 %v519
        %818 = vmatpush.msra.mxu0 %v518
        %819 = vmatpush.msra.mxu0 %v517
        %820 = vmatmul.f32.gmra.mxu0 %v735
        %v821 = vpop.f32.mrf.mxu0
        %v822 = vadd.f32 %v716, %v821
        %823 = vmatmul.f32.gmra.mxu0 %v738
        %v824 = vpop.f32.mrf.mxu0
        %v825 = vadd.f32 %v721, %v824
        %826 = vmatmul.f32.gmra.mxu0 %v741
        %v827 = vpop.f32.mrf.mxu0
        %v828 = vadd.f32 %v726, %v827
        %829 = vmatmul.f32.gmra.mxu0 %v744
        %v830 = vpop.f32.mrf.mxu0
        %v831 = vadd.f32 %v731, %v830
        %832 = vdwg.mxu0
        %833 = vmatpush.msra.mxu0 0.0
        %834 = vmatpush.msra.mxu0 0.0
        %835 = vmatpush.msra.mxu0 0.0
        %836 = vmatpush.msra.mxu0 0.0
        %837 = vmatpush.msra.mxu0 0.0
        %838 = vmatpush.msra.mxu0 0.0
        %839 = vmatpush.msra.mxu0 0.0
        %840 = vmatpush.msra.mxu0 0.0
        %841 = vmatpush.msra.mxu0 0.0
        %842 = vmatpush.msra.mxu0 0.0
        %843 = vmatpush.msra.mxu0 0.0
        %844 = vmatpush.msra.mxu0 0.0
        %845 = vmatpush.msra.mxu0 %v524
        %846 = vmatpush.msra.mxu0 %v523
        %847 = vmatpush.msra.mxu0 %v522
        %848 = vmatpush.msra.mxu0 %v521
        %849 = vmatmul.f32.gmra.mxu0 %v735
        %v850 = vpop.f32.mrf.mxu0
        %v851 = vadd.f32 %v716, %v850
        %852 = vmatmul.f32.gmra.mxu0 %v738
        %v853 = vpop.f32.mrf.mxu0
        %v854 = vadd.f32 %v721, %v853
        %855 = vmatmul.f32.gmra.mxu0 %v741
        %v856 = vpop.f32.mrf.mxu0
        %v857 = vadd.f32 %v726, %v856
        %858 = vmatmul.f32.gmra.mxu0 %v744
        %v859 = vpop.f32.mrf.mxu0
        %v860 = vadd.f32 %v731, %v859
        %861 = vdwg.mxu0
        %863 = vset.pattern.permute.xlu0 0
        %864 = vperm.xlu0 %863, %v322
        %v865 = vpop.permute.xlu0 %864
        %868 = vset.pattern.permute.xlu0 0
        %869 = vperm.xlu0 %868, %v323
        %v870 = vpop.permute.xlu0 %869
        %873 = vset.pattern.permute.xlu0 0
        %874 = vperm.xlu0 %873, %v324
        %v875 = vpop.permute.xlu0 %874
        %878 = vset.pattern.permute.xlu0 0
        %879 = vperm.xlu0 %878, %v325
        %v880 = vpop.permute.xlu0 %879
        %883 = vset.pattern.permute.xlu0 0
        %884 = vperm.xlu0 %883, %v326
        %v885 = vpop.permute.xlu0 %884
        %888 = vset.pattern.permute.xlu0 0
        %889 = vperm.xlu0 %888, %v327
        %v890 = vpop.permute.xlu0 %889
        %893 = vset.pattern.permute.xlu0 0
        %894 = vperm.xlu0 %893, %v328
        %v895 = vpop.permute.xlu0 %894
        %898 = vset.pattern.permute.xlu0 0
        %899 = vperm.xlu0 %898, %v329
        %v900 = vpop.permute.xlu0 %899
        %v903 = vsel %vm733, %v310, 0
        %v906 = vsel %vm733, %v311, 0
        %v909 = vsel %vm733, %v312, 0
        %v912 = vsel %vm733, %v313, 0
        %v915 = vsel %vm733, %v314, 0
        %v918 = vsel %vm733, %v315, 0
        %v921 = vsel %vm733, %v316, 0
        %v924 = vsel %vm733, %v317, 0
        %926 = vmatpush.msra.mxu0 0.0
        %927 = vmatpush.msra.mxu0 0.0
        %928 = vmatpush.msra.mxu0 0.0
        %929 = vmatpush.msra.mxu0 0.0
        %930 = vmatpush.msra.mxu0 0.0
        %931 = vmatpush.msra.mxu0 0.0
        %932 = vmatpush.msra.mxu0 0.0
        %933 = vmatpush.msra.mxu0 0.0
        %934 = vmatpush.msra.mxu0 0.0
        %935 = vmatpush.msra.mxu0 0.0
        %936 = vmatpush.msra.mxu0 0.0
        %937 = vmatpush.msra.mxu0 0.0
        %938 = vmatpush.msra.mxu0 %v700
        %939 = vmatpush.msra.mxu0 %v699
        %940 = vmatpush.msra.mxu0 %v698
        %941 = vmatpush.msra.mxu0 %v697
        %942 = vmatmul.f32.gmra.mxu0 %v903
        %v943 = vpop.f32.mrf.mxu0
        %v944 = vadd.f32 %v865, %v943
        %945 = vmatmul.f32.gmra.mxu0 %v906
        %v946 = vpop.f32.mrf.mxu0
        %v947 = vadd.f32 %v870, %v946
        %948 = vmatmul.f32.gmra.mxu0 %v909
        %v949 = vpop.f32.mrf.mxu0
        %v950 = vadd.f32 %v875, %v949
        %951 = vmatmul.f32.gmra.mxu0 %v912
        %v952 = vpop.f32.mrf.mxu0
        %v953 = vadd.f32 %v880, %v952
        %954 = vmatmul.f32.gmra.mxu0 %v915
        %v955 = vpop.f32.mrf.mxu0
        %v956 = vadd.f32 %v885, %v955
        %957 = vmatmul.f32.gmra.mxu0 %v918
        %v958 = vpop.f32.mrf.mxu0
        %v959 = vadd.f32 %v890, %v958
        %960 = vmatmul.f32.gmra.mxu0 %v921
        %v961 = vpop.f32.mrf.mxu0
        %v962 = vadd.f32 %v895, %v961
        %963 = vmatmul.f32.gmra.mxu0 %v924
        %v964 = vpop.f32.mrf.mxu0
        %v965 = vadd.f32 %v900, %v964
        %966 = vdwg.mxu0
        %967 = vmatpush.msra.mxu0 0.0
        %968 = vmatpush.msra.mxu0 0.0
        %969 = vmatpush.msra.mxu0 0.0
        %970 = vmatpush.msra.mxu0 0.0
        %971 = vmatpush.msra.mxu0 0.0
        %972 = vmatpush.msra.mxu0 0.0
        %973 = vmatpush.msra.mxu0 0.0
        %974 = vmatpush.msra.mxu0 0.0
        %975 = vmatpush.msra.mxu0 0.0
        %976 = vmatpush.msra.mxu0 0.0
        %977 = vmatpush.msra.mxu0 0.0
        %978 = vmatpush.msra.mxu0 0.0
        %979 = vmatpush.msra.mxu0 %v704
        %980 = vmatpush.msra.mxu0 %v703
        %981 = vmatpush.msra.mxu0 %v702
        %982 = vmatpush.msra.mxu0 %v701
        %983 = vmatmul.f32.gmra.mxu0 %v903
        %v984 = vpop.f32.mrf.mxu0
        %v985 = vadd.f32 %v865, %v984
        %986 = vmatmul.f32.gmra.mxu0 %v906
        %v987 = vpop.f32.mrf.mxu0
        %v988 = vadd.f32 %v870, %v987
        %989 = vmatmul.f32.gmra.mxu0 %v909
        %v990 = vpop.f32.mrf.mxu0
        %v991 = vadd.f32 %v875, %v990
        %992 = vmatmul.f32.gmra.mxu0 %v912
        %v993 = vpop.f32.mrf.mxu0
        %v994 = vadd.f32 %v880, %v993
        %995 = vmatmul.f32.gmra.mxu0 %v915
        %v996 = vpop.f32.mrf.mxu0
        %v997 = vadd.f32 %v885, %v996
        %998 = vmatmul.f32.gmra.mxu0 %v918
        %v999 = vpop.f32.mrf.mxu0
        %v1000 = vadd.f32 %v890, %v999
        %1001 = vmatmul.f32.gmra.mxu0 %v921
        %v1002 = vpop.f32.mrf.mxu0
        %v1003 = vadd.f32 %v895, %v1002
        %1004 = vmatmul.f32.gmra.mxu0 %v924
        %v1005 = vpop.f32.mrf.mxu0
        %v1006 = vadd.f32 %v900, %v1005
        %1007 = vdwg.mxu0
        %1008 = vmatpush.msra.mxu0 0.0
        %1009 = vmatpush.msra.mxu0 0.0
        %1010 = vmatpush.msra.mxu0 0.0
        %1011 = vmatpush.msra.mxu0 0.0
        %1012 = vmatpush.msra.mxu0 0.0
        %1013 = vmatpush.msra.mxu0 0.0
        %1014 = vmatpush.msra.mxu0 0.0
        %1015 = vmatpush.msra.mxu0 0.0
        %1016 = vmatpush.msra.mxu0 0.0
        %1017 = vmatpush.msra.mxu0 0.0
        %1018 = vmatpush.msra.mxu0 0.0
        %1019 = vmatpush.msra.mxu0 0.0
        %1020 = vmatpush.msra.mxu0 %v708
        %1021 = vmatpush.msra.mxu0 %v707
        %1022 = vmatpush.msra.mxu0 %v706
        %1023 = vmatpush.msra.mxu0 %v705
        %1024 = vmatmul.f32.gmra.mxu0 %v903
        %v1025 = vpop.f32.mrf.mxu0
        %v1026 = vadd.f32 %v865, %v1025
        %1027 = vmatmul.f32.gmra.mxu0 %v906
        %v1028 = vpop.f32.mrf.mxu0
        %v1029 = vadd.f32 %v870, %v1028
        %1030 = vmatmul.f32.gmra.mxu0 %v909
        %v1031 = vpop.f32.mrf.mxu0
        %v1032 = vadd.f32 %v875, %v1031
        %1033 = vmatmul.f32.gmra.mxu0 %v912
        %v1034 = vpop.f32.mrf.mxu0
        %v1035 = vadd.f32 %v880, %v1034
        %1036 = vmatmul.f32.gmra.mxu0 %v915
        %v1037 = vpop.f32.mrf.mxu0
        %v1038 = vadd.f32 %v885, %v1037
        %1039 = vmatmul.f32.gmra.mxu0 %v918
        %v1040 = vpop.f32.mrf.mxu0
        %v1041 = vadd.f32 %v890, %v1040
        %1042 = vmatmul.f32.gmra.mxu0 %v921
        %v1043 = vpop.f32.mrf.mxu0
        %v1044 = vadd.f32 %v895, %v1043
        %1045 = vmatmul.f32.gmra.mxu0 %v924
        %v1046 = vpop.f32.mrf.mxu0
        %v1047 = vadd.f32 %v900, %v1046
        %1048 = vdwg.mxu0
        %1049 = vmatpush.msra.mxu0 0.0
        %1050 = vmatpush.msra.mxu0 0.0
        %1051 = vmatpush.msra.mxu0 0.0
        %1052 = vmatpush.msra.mxu0 0.0
        %1053 = vmatpush.msra.mxu0 0.0
        %1054 = vmatpush.msra.mxu0 0.0
        %1055 = vmatpush.msra.mxu0 0.0
        %1056 = vmatpush.msra.mxu0 0.0
        %1057 = vmatpush.msra.mxu0 0.0
        %1058 = vmatpush.msra.mxu0 0.0
        %1059 = vmatpush.msra.mxu0 0.0
        %1060 = vmatpush.msra.mxu0 0.0
        %1061 = vmatpush.msra.mxu0 %v712
        %1062 = vmatpush.msra.mxu0 %v711
        %1063 = vmatpush.msra.mxu0 %v710
        %1064 = vmatpush.msra.mxu0 %v709
        %1065 = vmatmul.f32.gmra.mxu0 %v903
        %v1066 = vpop.f32.mrf.mxu0
        %v1067 = vadd.f32 %v865, %v1066
        %1068 = vmatmul.f32.gmra.mxu0 %v906
        %v1069 = vpop.f32.mrf.mxu0
        %v1070 = vadd.f32 %v870, %v1069
        %1071 = vmatmul.f32.gmra.mxu0 %v909
        %v1072 = vpop.f32.mrf.mxu0
        %v1073 = vadd.f32 %v875, %v1072
        %1074 = vmatmul.f32.gmra.mxu0 %v912
        %v1075 = vpop.f32.mrf.mxu0
        %v1076 = vadd.f32 %v880, %v1075
        %1077 = vmatmul.f32.gmra.mxu0 %v915
        %v1078 = vpop.f32.mrf.mxu0
        %v1079 = vadd.f32 %v885, %v1078
        %1080 = vmatmul.f32.gmra.mxu0 %v918
        %v1081 = vpop.f32.mrf.mxu0
        %v1082 = vadd.f32 %v890, %v1081
        %1083 = vmatmul.f32.gmra.mxu0 %v921
        %v1084 = vpop.f32.mrf.mxu0
        %v1085 = vadd.f32 %v895, %v1084
        %1086 = vmatmul.f32.gmra.mxu0 %v924
        %v1087 = vpop.f32.mrf.mxu0
        %v1088 = vadd.f32 %v900, %v1087
        %1089 = vdwg.mxu0
        %v1090 = vmul.f32 %v764, %v944
        %v1091 = vmul.f32 %v767, %v947
        %v1092 = vmul.f32 %v770, %v950
        %v1093 = vmul.f32 %v773, %v953
        %v1094 = vrot.slane %v1090, 4
        %v1095 = vadd.f32 %v1090, %v1094
        %v1096 = vrot.slane %v1095, 2
        %v1097 = vadd.f32 %v1095, %v1096
        %v1098 = vrot.slane %v1097, 1
        %v1099 = vadd.f32 %v1097, %v1098
        %v1100 = vrot.slane %v1091, 4
        %v1101 = vadd.f32 %v1091, %v1100
        %v1102 = vrot.slane %v1101, 2
        %v1103 = vadd.f32 %v1101, %v1102
        %v1104 = vrot.slane %v1103, 1
        %v1105 = vadd.f32 %v1103, %v1104
        %v1106 = vrot.slane %v1092, 4
        %v1107 = vadd.f32 %v1092, %v1106
        %v1108 = vrot.slane %v1107, 2
        %v1109 = vadd.f32 %v1107, %v1108
        %v1110 = vrot.slane %v1109, 1
        %v1111 = vadd.f32 %v1109, %v1110
        %v1112 = vrot.slane %v1093, 4
        %v1113 = vadd.f32 %v1093, %v1112
        %v1114 = vrot.slane %v1113, 2
        %v1115 = vadd.f32 %v1113, %v1114
        %v1116 = vrot.slane %v1115, 1
        %v1117 = vadd.f32 %v1115, %v1116
        %v1118 = vmul.f32 %v764, %v985
        %v1119 = vmul.f32 %v767, %v988
        %v1120 = vmul.f32 %v770, %v991
        %v1121 = vmul.f32 %v773, %v994
        %v1122 = vrot.slane %v1118, 4
        %v1123 = vadd.f32 %v1118, %v1122
        %v1124 = vrot.slane %v1123, 2
        %v1125 = vadd.f32 %v1123, %v1124
        %v1126 = vrot.slane %v1125, 1
        %v1127 = vadd.f32 %v1125, %v1126
        %v1128 = vrot.slane %v1119, 4
        %v1129 = vadd.f32 %v1119, %v1128
        %v1130 = vrot.slane %v1129, 2
        %v1131 = vadd.f32 %v1129, %v1130
        %v1132 = vrot.slane %v1131, 1
        %v1133 = vadd.f32 %v1131, %v1132
        %v1134 = vrot.slane %v1120, 4
        %v1135 = vadd.f32 %v1120, %v1134
        %v1136 = vrot.slane %v1135, 2
        %v1137 = vadd.f32 %v1135, %v1136
        %v1138 = vrot.slane %v1137, 1
        %v1139 = vadd.f32 %v1137, %v1138
        %v1140 = vrot.slane %v1121, 4
        %v1141 = vadd.f32 %v1121, %v1140
        %v1142 = vrot.slane %v1141, 2
        %v1143 = vadd.f32 %v1141, %v1142
        %v1144 = vrot.slane %v1143, 1
        %v1145 = vadd.f32 %v1143, %v1144
        %v1146 = vmul.f32 %v764, %v1026
        %v1147 = vmul.f32 %v767, %v1029
        %v1148 = vmul.f32 %v770, %v1032
        %v1149 = vmul.f32 %v773, %v1035
        %v1150 = vrot.slane %v1146, 4
        %v1151 = vadd.f32 %v1146, %v1150
        %v1152 = vrot.slane %v1151, 2
        %v1153 = vadd.f32 %v1151, %v1152
        %v1154 = vrot.slane %v1153, 1
        %v1155 = vadd.f32 %v1153, %v1154
        %v1156 = vrot.slane %v1147, 4
        %v1157 = vadd.f32 %v1147, %v1156
        %v1158 = vrot.slane %v1157, 2
        %v1159 = vadd.f32 %v1157, %v1158
        %v1160 = vrot.slane %v1159, 1
        %v1161 = vadd.f32 %v1159, %v1160
        %v1162 = vrot.slane %v1148, 4
        %v1163 = vadd.f32 %v1148, %v1162
        %v1164 = vrot.slane %v1163, 2
        %v1165 = vadd.f32 %v1163, %v1164
        %v1166 = vrot.slane %v1165, 1
        %v1167 = vadd.f32 %v1165, %v1166
        %v1168 = vrot.slane %v1149, 4
        %v1169 = vadd.f32 %v1149, %v1168
        %v1170 = vrot.slane %v1169, 2
        %v1171 = vadd.f32 %v1169, %v1170
        %v1172 = vrot.slane %v1171, 1
        %v1173 = vadd.f32 %v1171, %v1172
        %v1174 = vmul.f32 %v764, %v1067
        %v1175 = vmul.f32 %v767, %v1070
        %v1176 = vmul.f32 %v770, %v1073
        %v1177 = vmul.f32 %v773, %v1076
        %v1178 = vrot.slane %v1174, 4
        %v1179 = vadd.f32 %v1174, %v1178
        %v1180 = vrot.slane %v1179, 2
        %v1181 = vadd.f32 %v1179, %v1180
        %v1182 = vrot.slane %v1181, 1
        %v1183 = vadd.f32 %v1181, %v1182
        %v1184 = vrot.slane %v1175, 4
        %v1185 = vadd.f32 %v1175, %v1184
        %v1186 = vrot.slane %v1185, 2
        %v1187 = vadd.f32 %v1185, %v1186
        %v1188 = vrot.slane %v1187, 1
        %v1189 = vadd.f32 %v1187, %v1188
        %v1190 = vrot.slane %v1176, 4
        %v1191 = vadd.f32 %v1176, %v1190
        %v1192 = vrot.slane %v1191, 2
        %v1193 = vadd.f32 %v1191, %v1192
        %v1194 = vrot.slane %v1193, 1
        %v1195 = vadd.f32 %v1193, %v1194
        %v1196 = vrot.slane %v1177, 4
        %v1197 = vadd.f32 %v1177, %v1196
        %v1198 = vrot.slane %v1197, 2
        %v1199 = vadd.f32 %v1197, %v1198
        %v1200 = vrot.slane %v1199, 1
        %v1201 = vadd.f32 %v1199, %v1200
        %v1202 = vmax.f32 %v1099, %v1127
        %v1203 = vmax.f32 %v1105, %v1133
        %v1204 = vmax.f32 %v1111, %v1139
        %v1205 = vmax.f32 %v1117, %v1145
        %v1206 = vmax.f32 %v1202, %v1155
        %v1207 = vmax.f32 %v1203, %v1161
        %v1208 = vmax.f32 %v1204, %v1167
        %v1209 = vmax.f32 %v1205, %v1173
        %v1210 = vmax.f32 %v1206, %v1183
        %v1211 = vmax.f32 %v1207, %v1189
        %v1212 = vmax.f32 %v1208, %v1195
        %v1213 = vmax.f32 %v1209, %v1201
        %v1214 = vsub.f32 %v1099, %v1210
        %v1215 = vsub.f32 %v1105, %v1211
        %v1216 = vsub.f32 %v1111, %v1212
        %v1217 = vsub.f32 %v1117, %v1213
        %v1218 = vmul.f32 %v1214, 1.442695
        %v1219 = vpow.pop %v1218
        %v1220 = vmul.f32 %v1215, 1.442695
        %v1221 = vpow.pop %v1220
        %v1222 = vmul.f32 %v1216, 1.442695
        %v1223 = vpow.pop %v1222
        %v1224 = vmul.f32 %v1217, 1.442695
        %v1225 = vpow.pop %v1224
        %v1226 = vsub.f32 %v1127, %v1210
        %v1227 = vsub.f32 %v1133, %v1211
        %v1228 = vsub.f32 %v1139, %v1212
        %v1229 = vsub.f32 %v1145, %v1213
        %v1230 = vmul.f32 %v1226, 1.442695
        %v1231 = vpow.pop %v1230
        %v1232 = vmul.f32 %v1227, 1.442695
        %v1233 = vpow.pop %v1232
        %v1234 = vmul.f32 %v1228, 1.442695
        %v1235 = vpow.pop %v1234
        %v1236 = vmul.f32 %v1229, 1.442695
        %v1237 = vpow.pop %v1236
        %v1238 = vsub.f32 %v1155, %v1210
        %v1239 = vsub.f32 %v1161, %v1211
        %v1240 = vsub.f32 %v1167, %v1212
        %v1241 = vsub.f32 %v1173, %v1213
        %v1242 = vmul.f32 %v1238, 1.442695
        %v1243 = vpow.pop %v1242
        %v1244 = vmul.f32 %v1239, 1.442695
        %v1245 = vpow.pop %v1244
        %v1246 = vmul.f32 %v1240, 1.442695
        %v1247 = vpow.pop %v1246
        %v1248 = vmul.f32 %v1241, 1.442695
        %v1249 = vpow.pop %v1248
        %v1250 = vsub.f32 %v1183, %v1210
        %v1251 = vsub.f32 %v1189, %v1211
        %v1252 = vsub.f32 %v1195, %v1212
        %v1253 = vsub.f32 %v1201, %v1213
        %v1254 = vmul.f32 %v1250, 1.442695
        %v1255 = vpow.pop %v1254
        %v1256 = vmul.f32 %v1251, 1.442695
        %v1257 = vpow.pop %v1256
        %v1258 = vmul.f32 %v1252, 1.442695
        %v1259 = vpow.pop %v1258
        %v1260 = vmul.f32 %v1253, 1.442695
        %v1261 = vpow.pop %v1260
        %v1262 = vadd.f32 %v1219, %v1231
        %v1263 = vadd.f32 %v1221, %v1233
        %v1264 = vadd.f32 %v1223, %v1235
        %v1265 = vadd.f32 %v1225, %v1237
        %v1266 = vadd.f32 %v1262, %v1243
        %v1267 = vadd.f32 %v1263, %v1245
        %v1268 = vadd.f32 %v1264, %v1247
        %v1269 = vadd.f32 %v1265, %v1249
        %v1270 = vadd.f32 %v1266, %v1255
        %v1271 = vadd.f32 %v1267, %v1257
        %v1272 = vadd.f32 %v1268, %v1259
        %v1273 = vadd.f32 %v1269, %v1261
        %v1274 = vmul.f32 %v1219, %v956
        %v1275 = vmul.f32 %v1221, %v959
        %v1276 = vmul.f32 %v1223, %v962
        %v1277 = vmul.f32 %v1225, %v965
        %v1278 = vmul.f32 %v1231, %v997
        %v1279 = vmul.f32 %v1233, %v1000
        %v1280 = vmul.f32 %v1235, %v1003
        %v1281 = vmul.f32 %v1237, %v1006
        %v1282 = vadd.f32 %v1274, %v1278
        %v1283 = vadd.f32 %v1275, %v1279
        %v1284 = vadd.f32 %v1276, %v1280
        %v1285 = vadd.f32 %v1277, %v1281
        %v1286 = vmul.f32 %v1243, %v1038
        %v1287 = vmul.f32 %v1245, %v1041
        %v1288 = vmul.f32 %v1247, %v1044
        %v1289 = vmul.f32 %v1249, %v1047
        %v1290 = vadd.f32 %v1282, %v1286
        %v1291 = vadd.f32 %v1283, %v1287
        %v1292 = vadd.f32 %v1284, %v1288
        %v1293 = vadd.f32 %v1285, %v1289
        %v1294 = vmul.f32 %v1255, %v1079
        %v1295 = vmul.f32 %v1257, %v1082
        %v1296 = vmul.f32 %v1259, %v1085
        %v1297 = vmul.f32 %v1261, %v1088
        %v1298 = vadd.f32 %v1290, %v1294
        %v1299 = vadd.f32 %v1291, %v1295
        %v1300 = vadd.f32 %v1292, %v1296
        %v1301 = vadd.f32 %v1293, %v1297
        %v1302 = vrcp.pop %v1270
        %v1303 = vmul.f32 %v1270, %v1302
        %v1304 = vsub.f32 1.0, %v1303
        %v1305 = vmul.f32 %v1302, %v1304
        %v1306 = vadd.f32 %v1302, %v1305
        %vm1307 = vweird.f32 %v1270
        %vm1308 = vweird.f32 %v1302
        %vm1309 = vmor %vm1307, %vm1308
        %v1310 = vsel %vm1309, %v1302, %v1306
        %v1311 = vand.u32 2147483647, %v1270
        %vm1312 = vcmp.eq.f32.partialorder %v1311, 8.507059e+37
        %v1313 = vand.u32 %v1270, 2147483648
        %v1314 = vor.u32 1.1754944e-38, %v1313
        %v1315 = vsel %vm1312, %v1314, %v1310
        %v1316 = vrcp.pop %v1271
        %v1317 = vmul.f32 %v1271, %v1316
        %v1318 = vsub.f32 1.0, %v1317
        %v1319 = vmul.f32 %v1316, %v1318
        %v1320 = vadd.f32 %v1316, %v1319
        %vm1321 = vweird.f32 %v1271
        %vm1322 = vweird.f32 %v1316
        %vm1323 = vmor %vm1321, %vm1322
        %v1324 = vsel %vm1323, %v1316, %v1320
        %v1325 = vand.u32 2147483647, %v1271
        %vm1326 = vcmp.eq.f32.partialorder %v1325, 8.507059e+37
        %v1327 = vand.u32 %v1271, 2147483648
        %v1328 = vor.u32 1.1754944e-38, %v1327
        %v1329 = vsel %vm1326, %v1328, %v1324
        %v1330 = vrcp.pop %v1272
        %v1331 = vmul.f32 %v1272, %v1330
        %v1332 = vsub.f32 1.0, %v1331
        %v1333 = vmul.f32 %v1330, %v1332
        %v1334 = vadd.f32 %v1330, %v1333
        %vm1335 = vweird.f32 %v1272
        %vm1336 = vweird.f32 %v1330
        %vm1337 = vmor %vm1335, %vm1336
        %v1338 = vsel %vm1337, %v1330, %v1334
        %v1339 = vand.u32 2147483647, %v1272
        %vm1340 = vcmp.eq.f32.partialorder %v1339, 8.507059e+37
        %v1341 = vand.u32 %v1272, 2147483648
        %v1342 = vor.u32 1.1754944e-38, %v1341
        %v1343 = vsel %vm1340, %v1342, %v1338
        %v1344 = vrcp.pop %v1273
        %v1345 = vmul.f32 %v1273, %v1344
        %v1346 = vsub.f32 1.0, %v1345
        %v1347 = vmul.f32 %v1344, %v1346
        %v1348 = vadd.f32 %v1344, %v1347
        %vm1349 = vweird.f32 %v1273
        %vm1350 = vweird.f32 %v1344
        %vm1351 = vmor %vm1349, %vm1350
        %v1352 = vsel %vm1351, %v1344, %v1348
        %v1353 = vand.u32 2147483647, %v1273
        %vm1354 = vcmp.eq.f32.partialorder %v1353, 8.507059e+37
        %v1355 = vand.u32 %v1273, 2147483648
        %v1356 = vor.u32 1.1754944e-38, %v1355
        %v1357 = vsel %vm1354, %v1356, %v1352
        %v1358 = vmul.f32 %v1298, %v1315
        %v1359 = vmul.f32 %v1299, %v1329
        %v1360 = vmul.f32 %v1300, %v1343
        %v1361 = vmul.f32 %v1301, %v1357
        %1362 = vst [vmem:[%s287] sm:$0xff] %v1358
        %1363 = vst [vmem:[%s287 + $0x8] sm:$0xff] %v1359
        %1364 = vst [vmem:[%s287 + $0x10] sm:$0xff] %v1360
        %1365 = vst [vmem:[%s287 + $0x18] sm:$0xff] %v1361
        %v1366 = vmul.f32 %v793, %v944
        %v1367 = vmul.f32 %v796, %v947
        %v1368 = vmul.f32 %v799, %v950
        %v1369 = vmul.f32 %v802, %v953
        %v1370 = vrot.slane %v1366, 4
        %v1371 = vadd.f32 %v1366, %v1370
        %v1372 = vrot.slane %v1371, 2
        %v1373 = vadd.f32 %v1371, %v1372
        %v1374 = vrot.slane %v1373, 1
        %v1375 = vadd.f32 %v1373, %v1374
        %v1376 = vrot.slane %v1367, 4
        %v1377 = vadd.f32 %v1367, %v1376
        %v1378 = vrot.slane %v1377, 2
        %v1379 = vadd.f32 %v1377, %v1378
        %v1380 = vrot.slane %v1379, 1
        %v1381 = vadd.f32 %v1379, %v1380
        %v1382 = vrot.slane %v1368, 4
        %v1383 = vadd.f32 %v1368, %v1382
        %v1384 = vrot.slane %v1383, 2
        %v1385 = vadd.f32 %v1383, %v1384
        %v1386 = vrot.slane %v1385, 1
        %v1387 = vadd.f32 %v1385, %v1386
        %v1388 = vrot.slane %v1369, 4
        %v1389 = vadd.f32 %v1369, %v1388
        %v1390 = vrot.slane %v1389, 2
        %v1391 = vadd.f32 %v1389, %v1390
        %v1392 = vrot.slane %v1391, 1
        %v1393 = vadd.f32 %v1391, %v1392
        %v1394 = vmul.f32 %v793, %v985
        %v1395 = vmul.f32 %v796, %v988
        %v1396 = vmul.f32 %v799, %v991
        %v1397 = vmul.f32 %v802, %v994
        %v1398 = vrot.slane %v1394, 4
        %v1399 = vadd.f32 %v1394, %v1398
        %v1400 = vrot.slane %v1399, 2
        %v1401 = vadd.f32 %v1399, %v1400
        %v1402 = vrot.slane %v1401, 1
        %v1403 = vadd.f32 %v1401, %v1402
        %v1404 = vrot.slane %v1395, 4
        %v1405 = vadd.f32 %v1395, %v1404
        %v1406 = vrot.slane %v1405, 2
        %v1407 = vadd.f32 %v1405, %v1406
        %v1408 = vrot.slane %v1407, 1
        %v1409 = vadd.f32 %v1407, %v1408
        %v1410 = vrot.slane %v1396, 4
        %v1411 = vadd.f32 %v1396, %v1410
        %v1412 = vrot.slane %v1411, 2
        %v1413 = vadd.f32 %v1411, %v1412
        %v1414 = vrot.slane %v1413, 1
        %v1415 = vadd.f32 %v1413, %v1414
        %v1416 = vrot.slane %v1397, 4
        %v1417 = vadd.f32 %v1397, %v1416
        %v1418 = vrot.slane %v1417, 2
        %v1419 = vadd.f32 %v1417, %v1418
        %v1420 = vrot.slane %v1419, 1
        %v1421 = vadd.f32 %v1419, %v1420
        %v1422 = vmul.f32 %v793, %v1026
        %v1423 = vmul.f32 %v796, %v1029
        %v1424 = vmul.f32 %v799, %v1032
        %v1425 = vmul.f32 %v802, %v1035
        %v1426 = vrot.slane %v1422, 4
        %v1427 = vadd.f32 %v1422, %v1426
        %v1428 = vrot.slane %v1427, 2
        %v1429 = vadd.f32 %v1427, %v1428
        %v1430 = vrot.slane %v1429, 1
        %v1431 = vadd.f32 %v1429, %v1430
        %v1432 = vrot.slane %v1423, 4
        %v1433 = vadd.f32 %v1423, %v1432
        %v1434 = vrot.slane %v1433, 2
        %v1435 = vadd.f32 %v1433, %v1434
        %v1436 = vrot.slane %v1435, 1
        %v1437 = vadd.f32 %v1435, %v1436
        %v1438 = vrot.slane %v1424, 4
        %v1439 = vadd.f32 %v1424, %v1438
        %v1440 = vrot.slane %v1439, 2
        %v1441 = vadd.f32 %v1439, %v1440
        %v1442 = vrot.slane %v1441, 1
        %v1443 = vadd.f32 %v1441, %v1442
        %v1444 = vrot.slane %v1425, 4
        %v1445 = vadd.f32 %v1425, %v1444
        %v1446 = vrot.slane %v1445, 2
        %v1447 = vadd.f32 %v1445, %v1446
        %v1448 = vrot.slane %v1447, 1
        %v1449 = vadd.f32 %v1447, %v1448
        %v1450 = vmul.f32 %v793, %v1067
        %v1451 = vmul.f32 %v796, %v1070
        %v1452 = vmul.f32 %v799, %v1073
        %v1453 = vmul.f32 %v802, %v1076
        %v1454 = vrot.slane %v1450, 4
        %v1455 = vadd.f32 %v1450, %v1454
        %v1456 = vrot.slane %v1455, 2
        %v1457 = vadd.f32 %v1455, %v1456
        %v1458 = vrot.slane %v1457, 1
        %v1459 = vadd.f32 %v1457, %v1458
        %v1460 = vrot.slane %v1451, 4
        %v1461 = vadd.f32 %v1451, %v1460
        %v1462 = vrot.slane %v1461, 2
        %v1463 = vadd.f32 %v1461, %v1462
        %v1464 = vrot.slane %v1463, 1
        %v1465 = vadd.f32 %v1463, %v1464
        %v1466 = vrot.slane %v1452, 4
        %v1467 = vadd.f32 %v1452, %v1466
        %v1468 = vrot.slane %v1467, 2
        %v1469 = vadd.f32 %v1467, %v1468
        %v1470 = vrot.slane %v1469, 1
        %v1471 = vadd.f32 %v1469, %v1470
        %v1472 = vrot.slane %v1453, 4
        %v1473 = vadd.f32 %v1453, %v1472
        %v1474 = vrot.slane %v1473, 2
        %v1475 = vadd.f32 %v1473, %v1474
        %v1476 = vrot.slane %v1475, 1
        %v1477 = vadd.f32 %v1475, %v1476
        %v1478 = vmax.f32 %v1375, %v1403
        %v1479 = vmax.f32 %v1381, %v1409
        %v1480 = vmax.f32 %v1387, %v1415
        %v1481 = vmax.f32 %v1393, %v1421
        %v1482 = vmax.f32 %v1478, %v1431
        %v1483 = vmax.f32 %v1479, %v1437
        %v1484 = vmax.f32 %v1480, %v1443
        %v1485 = vmax.f32 %v1481, %v1449
        %v1486 = vmax.f32 %v1482, %v1459
        %v1487 = vmax.f32 %v1483, %v1465
        %v1488 = vmax.f32 %v1484, %v1471
        %v1489 = vmax.f32 %v1485, %v1477
        %v1490 = vsub.f32 %v1375, %v1486
        %v1491 = vsub.f32 %v1381, %v1487
        %v1492 = vsub.f32 %v1387, %v1488
        %v1493 = vsub.f32 %v1393, %v1489
        %v1494 = vmul.f32 %v1490, 1.442695
        %v1495 = vpow.pop %v1494
        %v1496 = vmul.f32 %v1491, 1.442695
        %v1497 = vpow.pop %v1496
        %v1498 = vmul.f32 %v1492, 1.442695
        %v1499 = vpow.pop %v1498
        %v1500 = vmul.f32 %v1493, 1.442695
        %v1501 = vpow.pop %v1500
        %v1502 = vsub.f32 %v1403, %v1486
        %v1503 = vsub.f32 %v1409, %v1487
        %v1504 = vsub.f32 %v1415, %v1488
        %v1505 = vsub.f32 %v1421, %v1489
        %v1506 = vmul.f32 %v1502, 1.442695
        %v1507 = vpow.pop %v1506
        %v1508 = vmul.f32 %v1503, 1.442695
        %v1509 = vpow.pop %v1508
        %v1510 = vmul.f32 %v1504, 1.442695
        %v1511 = vpow.pop %v1510
        %v1512 = vmul.f32 %v1505, 1.442695
        %v1513 = vpow.pop %v1512
        %v1514 = vsub.f32 %v1431, %v1486
        %v1515 = vsub.f32 %v1437, %v1487
        %v1516 = vsub.f32 %v1443, %v1488
        %v1517 = vsub.f32 %v1449, %v1489
        %v1518 = vmul.f32 %v1514, 1.442695
        %v1519 = vpow.pop %v1518
        %v1520 = vmul.f32 %v1515, 1.442695
        %v1521 = vpow.pop %v1520
        %v1522 = vmul.f32 %v1516, 1.442695
        %v1523 = vpow.pop %v1522
        %v1524 = vmul.f32 %v1517, 1.442695
        %v1525 = vpow.pop %v1524
        %v1526 = vsub.f32 %v1459, %v1486
        %v1527 = vsub.f32 %v1465, %v1487
        %v1528 = vsub.f32 %v1471, %v1488
        %v1529 = vsub.f32 %v1477, %v1489
        %v1530 = vmul.f32 %v1526, 1.442695
        %v1531 = vpow.pop %v1530
        %v1532 = vmul.f32 %v1527, 1.442695
        %v1533 = vpow.pop %v1532
        %v1534 = vmul.f32 %v1528, 1.442695
        %v1535 = vpow.pop %v1534
        %v1536 = vmul.f32 %v1529, 1.442695
        %v1537 = vpow.pop %v1536
        %v1538 = vadd.f32 %v1495, %v1507
        %v1539 = vadd.f32 %v1497, %v1509
        %v1540 = vadd.f32 %v1499, %v1511
        %v1541 = vadd.f32 %v1501, %v1513
        %v1542 = vadd.f32 %v1538, %v1519
        %v1543 = vadd.f32 %v1539, %v1521
        %v1544 = vadd.f32 %v1540, %v1523
        %v1545 = vadd.f32 %v1541, %v1525
        %v1546 = vadd.f32 %v1542, %v1531
        %v1547 = vadd.f32 %v1543, %v1533
        %v1548 = vadd.f32 %v1544, %v1535
        %v1549 = vadd.f32 %v1545, %v1537
        %v1550 = vmul.f32 %v1495, %v956
        %v1551 = vmul.f32 %v1497, %v959
        %v1552 = vmul.f32 %v1499, %v962
        %v1553 = vmul.f32 %v1501, %v965
        %v1554 = vmul.f32 %v1507, %v997
        %v1555 = vmul.f32 %v1509, %v1000
        %v1556 = vmul.f32 %v1511, %v1003
        %v1557 = vmul.f32 %v1513, %v1006
        %v1558 = vadd.f32 %v1550, %v1554
        %v1559 = vadd.f32 %v1551, %v1555
        %v1560 = vadd.f32 %v1552, %v1556
        %v1561 = vadd.f32 %v1553, %v1557
        %v1562 = vmul.f32 %v1519, %v1038
        %v1563 = vmul.f32 %v1521, %v1041
        %v1564 = vmul.f32 %v1523, %v1044
        %v1565 = vmul.f32 %v1525, %v1047
        %v1566 = vadd.f32 %v1558, %v1562
        %v1567 = vadd.f32 %v1559, %v1563
        %v1568 = vadd.f32 %v1560, %v1564
        %v1569 = vadd.f32 %v1561, %v1565
        %v1570 = vmul.f32 %v1531, %v1079
        %v1571 = vmul.f32 %v1533, %v1082
        %v1572 = vmul.f32 %v1535, %v1085
        %v1573 = vmul.f32 %v1537, %v1088
        %v1574 = vadd.f32 %v1566, %v1570
        %v1575 = vadd.f32 %v1567, %v1571
        %v1576 = vadd.f32 %v1568, %v1572
        %v1577 = vadd.f32 %v1569, %v1573
        %v1578 = vrcp.pop %v1546
        %v1579 = vmul.f32 %v1546, %v1578
        %v1580 = vsub.f32 1.0, %v1579
        %v1581 = vmul.f32 %v1578, %v1580
        %v1582 = vadd.f32 %v1578, %v1581
        %vm1583 = vweird.f32 %v1546
        %vm1584 = vweird.f32 %v1578
        %vm1585 = vmor %vm1583, %vm1584
        %v1586 = vsel %vm1585, %v1578, %v1582
        %v1587 = vand.u32 2147483647, %v1546
        %vm1588 = vcmp.eq.f32.partialorder %v1587, 8.507059e+37
        %v1589 = vand.u32 %v1546, 2147483648
        %v1590 = vor.u32 1.1754944e-38, %v1589
        %v1591 = vsel %vm1588, %v1590, %v1586
        %v1592 = vrcp.pop %v1547
        %v1593 = vmul.f32 %v1547, %v1592
        %v1594 = vsub.f32 1.0, %v1593
        %v1595 = vmul.f32 %v1592, %v1594
        %v1596 = vadd.f32 %v1592, %v1595
        %vm1597 = vweird.f32 %v1547
        %vm1598 = vweird.f32 %v1592
        %vm1599 = vmor %vm1597, %vm1598
        %v1600 = vsel %vm1599, %v1592, %v1596
        %v1601 = vand.u32 2147483647, %v1547
        %vm1602 = vcmp.eq.f32.partialorder %v1601, 8.507059e+37
        %v1603 = vand.u32 %v1547, 2147483648
        %v1604 = vor.u32 1.1754944e-38, %v1603
        %v1605 = vsel %vm1602, %v1604, %v1600
        %v1606 = vrcp.pop %v1548
        %v1607 = vmul.f32 %v1548, %v1606
        %v1608 = vsub.f32 1.0, %v1607
        %v1609 = vmul.f32 %v1606, %v1608
        %v1610 = vadd.f32 %v1606, %v1609
        %vm1611 = vweird.f32 %v1548
        %vm1612 = vweird.f32 %v1606
        %vm1613 = vmor %vm1611, %vm1612
        %v1614 = vsel %vm1613, %v1606, %v1610
        %v1615 = vand.u32 2147483647, %v1548
        %vm1616 = vcmp.eq.f32.partialorder %v1615, 8.507059e+37
        %v1617 = vand.u32 %v1548, 2147483648
        %v1618 = vor.u32 1.1754944e-38, %v1617
        %v1619 = vsel %vm1616, %v1618, %v1614
        %v1620 = vrcp.pop %v1549
        %v1621 = vmul.f32 %v1549, %v1620
        %v1622 = vsub.f32 1.0, %v1621
        %v1623 = vmul.f32 %v1620, %v1622
        %v1624 = vadd.f32 %v1620, %v1623
        %vm1625 = vweird.f32 %v1549
        %vm1626 = vweird.f32 %v1620
        %vm1627 = vmor %vm1625, %vm1626
        %v1628 = vsel %vm1627, %v1620, %v1624
        %v1629 = vand.u32 2147483647, %v1549
        %vm1630 = vcmp.eq.f32.partialorder %v1629, 8.507059e+37
        %v1631 = vand.u32 %v1549, 2147483648
        %v1632 = vor.u32 1.1754944e-38, %v1631
        %v1633 = vsel %vm1630, %v1632, %v1628
        %v1634 = vmul.f32 %v1574, %v1591
        %v1635 = vmul.f32 %v1575, %v1605
        %v1636 = vmul.f32 %v1576, %v1619
        %v1637 = vmul.f32 %v1577, %v1633
        %s1638 = scalar_lea.vmem %s287, 32 [#allocation5]
        %1639 = vst [vmem:[%s1638] sm:$0xff] %v1634
        %1640 = vst [vmem:[%s1638 + $0x8] sm:$0xff] %v1635
        %1641 = vst [vmem:[%s1638 + $0x10] sm:$0xff] %v1636
        %1642 = vst [vmem:[%s1638 + $0x18] sm:$0xff] %v1637
        %v1643 = vmul.f32 %v822, %v944
        %v1644 = vmul.f32 %v825, %v947
        %v1645 = vmul.f32 %v828, %v950
        %v1646 = vmul.f32 %v831, %v953
        %v1647 = vrot.slane %v1643, 4
        %v1648 = vadd.f32 %v1643, %v1647
        %v1649 = vrot.slane %v1648, 2
        %v1650 = vadd.f32 %v1648, %v1649
        %v1651 = vrot.slane %v1650, 1
        %v1652 = vadd.f32 %v1650, %v1651
        %v1653 = vrot.slane %v1644, 4
        %v1654 = vadd.f32 %v1644, %v1653
        %v1655 = vrot.slane %v1654, 2
        %v1656 = vadd.f32 %v1654, %v1655
        %v1657 = vrot.slane %v1656, 1
        %v1658 = vadd.f32 %v1656, %v1657
        %v1659 = vrot.slane %v1645, 4
        %v1660 = vadd.f32 %v1645, %v1659
        %v1661 = vrot.slane %v1660, 2
        %v1662 = vadd.f32 %v1660, %v1661
        %v1663 = vrot.slane %v1662, 1
        %v1664 = vadd.f32 %v1662, %v1663
        %v1665 = vrot.slane %v1646, 4
        %v1666 = vadd.f32 %v1646, %v1665
        %v1667 = vrot.slane %v1666, 2
        %v1668 = vadd.f32 %v1666, %v1667
        %v1669 = vrot.slane %v1668, 1
        %v1670 = vadd.f32 %v1668, %v1669
        %v1671 = vmul.f32 %v822, %v985
        %v1672 = vmul.f32 %v825, %v988
        %v1673 = vmul.f32 %v828, %v991
        %v1674 = vmul.f32 %v831, %v994
        %v1675 = vrot.slane %v1671, 4
        %v1676 = vadd.f32 %v1671, %v1675
        %v1677 = vrot.slane %v1676, 2
        %v1678 = vadd.f32 %v1676, %v1677
        %v1679 = vrot.slane %v1678, 1
        %v1680 = vadd.f32 %v1678, %v1679
        %v1681 = vrot.slane %v1672, 4
        %v1682 = vadd.f32 %v1672, %v1681
        %v1683 = vrot.slane %v1682, 2
        %v1684 = vadd.f32 %v1682, %v1683
        %v1685 = vrot.slane %v1684, 1
        %v1686 = vadd.f32 %v1684, %v1685
        %v1687 = vrot.slane %v1673, 4
        %v1688 = vadd.f32 %v1673, %v1687
        %v1689 = vrot.slane %v1688, 2
        %v1690 = vadd.f32 %v1688, %v1689
        %v1691 = vrot.slane %v1690, 1
        %v1692 = vadd.f32 %v1690, %v1691
        %v1693 = vrot.slane %v1674, 4
        %v1694 = vadd.f32 %v1674, %v1693
        %v1695 = vrot.slane %v1694, 2
        %v1696 = vadd.f32 %v1694, %v1695
        %v1697 = vrot.slane %v1696, 1
        %v1698 = vadd.f32 %v1696, %v1697
        %v1699 = vmul.f32 %v822, %v1026
        %v1700 = vmul.f32 %v825, %v1029
        %v1701 = vmul.f32 %v828, %v1032
        %v1702 = vmul.f32 %v831, %v1035
        %v1703 = vrot.slane %v1699, 4
        %v1704 = vadd.f32 %v1699, %v1703
        %v1705 = vrot.slane %v1704, 2
        %v1706 = vadd.f32 %v1704, %v1705
        %v1707 = vrot.slane %v1706, 1
        %v1708 = vadd.f32 %v1706, %v1707
        %v1709 = vrot.slane %v1700, 4
        %v1710 = vadd.f32 %v1700, %v1709
        %v1711 = vrot.slane %v1710, 2
        %v1712 = vadd.f32 %v1710, %v1711
        %v1713 = vrot.slane %v1712, 1
        %v1714 = vadd.f32 %v1712, %v1713
        %v1715 = vrot.slane %v1701, 4
        %v1716 = vadd.f32 %v1701, %v1715
        %v1717 = vrot.slane %v1716, 2
        %v1718 = vadd.f32 %v1716, %v1717
        %v1719 = vrot.slane %v1718, 1
        %v1720 = vadd.f32 %v1718, %v1719
        %v1721 = vrot.slane %v1702, 4
        %v1722 = vadd.f32 %v1702, %v1721
        %v1723 = vrot.slane %v1722, 2
        %v1724 = vadd.f32 %v1722, %v1723
        %v1725 = vrot.slane %v1724, 1
        %v1726 = vadd.f32 %v1724, %v1725
        %v1727 = vmul.f32 %v822, %v1067
        %v1728 = vmul.f32 %v825, %v1070
        %v1729 = vmul.f32 %v828, %v1073
        %v1730 = vmul.f32 %v831, %v1076
        %v1731 = vrot.slane %v1727, 4
        %v1732 = vadd.f32 %v1727, %v1731
        %v1733 = vrot.slane %v1732, 2
        %v1734 = vadd.f32 %v1732, %v1733
        %v1735 = vrot.slane %v1734, 1
        %v1736 = vadd.f32 %v1734, %v1735
        %v1737 = vrot.slane %v1728, 4
        %v1738 = vadd.f32 %v1728, %v1737
        %v1739 = vrot.slane %v1738, 2
        %v1740 = vadd.f32 %v1738, %v1739
        %v1741 = vrot.slane %v1740, 1
        %v1742 = vadd.f32 %v1740, %v1741
        %v1743 = vrot.slane %v1729, 4
        %v1744 = vadd.f32 %v1729, %v1743
        %v1745 = vrot.slane %v1744, 2
        %v1746 = vadd.f32 %v1744, %v1745
        %v1747 = vrot.slane %v1746, 1
        %v1748 = vadd.f32 %v1746, %v1747
        %v1749 = vrot.slane %v1730, 4
        %v1750 = vadd.f32 %v1730, %v1749
        %v1751 = vrot.slane %v1750, 2
        %v1752 = vadd.f32 %v1750, %v1751
        %v1753 = vrot.slane %v1752, 1
        %v1754 = vadd.f32 %v1752, %v1753
        %v1755 = vmax.f32 %v1652, %v1680
        %v1756 = vmax.f32 %v1658, %v1686
        %v1757 = vmax.f32 %v1664, %v1692
        %v1758 = vmax.f32 %v1670, %v1698
        %v1759 = vmax.f32 %v1755, %v1708
        %v1760 = vmax.f32 %v1756, %v1714
        %v1761 = vmax.f32 %v1757, %v1720
        %v1762 = vmax.f32 %v1758, %v1726
        %v1763 = vmax.f32 %v1759, %v1736
        %v1764 = vmax.f32 %v1760, %v1742
        %v1765 = vmax.f32 %v1761, %v1748
        %v1766 = vmax.f32 %v1762, %v1754
        %v1767 = vsub.f32 %v1652, %v1763
        %v1768 = vsub.f32 %v1658, %v1764
        %v1769 = vsub.f32 %v1664, %v1765
        %v1770 = vsub.f32 %v1670, %v1766
        %v1771 = vmul.f32 %v1767, 1.442695
        %v1772 = vpow.pop %v1771
        %v1773 = vmul.f32 %v1768, 1.442695
        %v1774 = vpow.pop %v1773
        %v1775 = vmul.f32 %v1769, 1.442695
        %v1776 = vpow.pop %v1775
        %v1777 = vmul.f32 %v1770, 1.442695
        %v1778 = vpow.pop %v1777
        %v1779 = vsub.f32 %v1680, %v1763
        %v1780 = vsub.f32 %v1686, %v1764
        %v1781 = vsub.f32 %v1692, %v1765
        %v1782 = vsub.f32 %v1698, %v1766
        %v1783 = vmul.f32 %v1779, 1.442695
        %v1784 = vpow.pop %v1783
        %v1785 = vmul.f32 %v1780, 1.442695
        %v1786 = vpow.pop %v1785
        %v1787 = vmul.f32 %v1781, 1.442695
        %v1788 = vpow.pop %v1787
        %v1789 = vmul.f32 %v1782, 1.442695
        %v1790 = vpow.pop %v1789
        %v1791 = vsub.f32 %v1708, %v1763
        %v1792 = vsub.f32 %v1714, %v1764
        %v1793 = vsub.f32 %v1720, %v1765
        %v1794 = vsub.f32 %v1726, %v1766
        %v1795 = vmul.f32 %v1791, 1.442695
        %v1796 = vpow.pop %v1795
        %v1797 = vmul.f32 %v1792, 1.442695
        %v1798 = vpow.pop %v1797
        %v1799 = vmul.f32 %v1793, 1.442695
        %v1800 = vpow.pop %v1799
        %v1801 = vmul.f32 %v1794, 1.442695
        %v1802 = vpow.pop %v1801
        %v1803 = vsub.f32 %v1736, %v1763
        %v1804 = vsub.f32 %v1742, %v1764
        %v1805 = vsub.f32 %v1748, %v1765
        %v1806 = vsub.f32 %v1754, %v1766
        %v1807 = vmul.f32 %v1803, 1.442695
        %v1808 = vpow.pop %v1807
        %v1809 = vmul.f32 %v1804, 1.442695
        %v1810 = vpow.pop %v1809
        %v1811 = vmul.f32 %v1805, 1.442695
        %v1812 = vpow.pop %v1811
        %v1813 = vmul.f32 %v1806, 1.442695
        %v1814 = vpow.pop %v1813
        %v1815 = vadd.f32 %v1772, %v1784
        %v1816 = vadd.f32 %v1774, %v1786
        %v1817 = vadd.f32 %v1776, %v1788
        %v1818 = vadd.f32 %v1778, %v1790
        %v1819 = vadd.f32 %v1815, %v1796
        %v1820 = vadd.f32 %v1816, %v1798
        %v1821 = vadd.f32 %v1817, %v1800
        %v1822 = vadd.f32 %v1818, %v1802
        %v1823 = vadd.f32 %v1819, %v1808
        %v1824 = vadd.f32 %v1820, %v1810
        %v1825 = vadd.f32 %v1821, %v1812
        %v1826 = vadd.f32 %v1822, %v1814
        %v1827 = vmul.f32 %v1772, %v956
        %v1828 = vmul.f32 %v1774, %v959
        %v1829 = vmul.f32 %v1776, %v962
        %v1830 = vmul.f32 %v1778, %v965
        %v1831 = vmul.f32 %v1784, %v997
        %v1832 = vmul.f32 %v1786, %v1000
        %v1833 = vmul.f32 %v1788, %v1003
        %v1834 = vmul.f32 %v1790, %v1006
        %v1835 = vadd.f32 %v1827, %v1831
        %v1836 = vadd.f32 %v1828, %v1832
        %v1837 = vadd.f32 %v1829, %v1833
        %v1838 = vadd.f32 %v1830, %v1834
        %v1839 = vmul.f32 %v1796, %v1038
        %v1840 = vmul.f32 %v1798, %v1041
        %v1841 = vmul.f32 %v1800, %v1044
        %v1842 = vmul.f32 %v1802, %v1047
        %v1843 = vadd.f32 %v1835, %v1839
        %v1844 = vadd.f32 %v1836, %v1840
        %v1845 = vadd.f32 %v1837, %v1841
        %v1846 = vadd.f32 %v1838, %v1842
        %v1847 = vmul.f32 %v1808, %v1079
        %v1848 = vmul.f32 %v1810, %v1082
        %v1849 = vmul.f32 %v1812, %v1085
        %v1850 = vmul.f32 %v1814, %v1088
        %v1851 = vadd.f32 %v1843, %v1847
        %v1852 = vadd.f32 %v1844, %v1848
        %v1853 = vadd.f32 %v1845, %v1849
        %v1854 = vadd.f32 %v1846, %v1850
        %v1855 = vrcp.pop %v1823
        %v1856 = vmul.f32 %v1823, %v1855
        %v1857 = vsub.f32 1.0, %v1856
        %v1858 = vmul.f32 %v1855, %v1857
        %v1859 = vadd.f32 %v1855, %v1858
        %vm1860 = vweird.f32 %v1823
        %vm1861 = vweird.f32 %v1855
        %vm1862 = vmor %vm1860, %vm1861
        %v1863 = vsel %vm1862, %v1855, %v1859
        %v1864 = vand.u32 2147483647, %v1823
        %vm1865 = vcmp.eq.f32.partialorder %v1864, 8.507059e+37
        %v1866 = vand.u32 %v1823, 2147483648
        %v1867 = vor.u32 1.1754944e-38, %v1866
        %v1868 = vsel %vm1865, %v1867, %v1863
        %v1869 = vrcp.pop %v1824
        %v1870 = vmul.f32 %v1824, %v1869
        %v1871 = vsub.f32 1.0, %v1870
        %v1872 = vmul.f32 %v1869, %v1871
        %v1873 = vadd.f32 %v1869, %v1872
        %vm1874 = vweird.f32 %v1824
        %vm1875 = vweird.f32 %v1869
        %vm1876 = vmor %vm1874, %vm1875
        %v1877 = vsel %vm1876, %v1869, %v1873
        %v1878 = vand.u32 2147483647, %v1824
        %vm1879 = vcmp.eq.f32.partialorder %v1878, 8.507059e+37
        %v1880 = vand.u32 %v1824, 2147483648
        %v1881 = vor.u32 1.1754944e-38, %v1880
        %v1882 = vsel %vm1879, %v1881, %v1877
        %v1883 = vrcp.pop %v1825
        %v1884 = vmul.f32 %v1825, %v1883
        %v1885 = vsub.f32 1.0, %v1884
        %v1886 = vmul.f32 %v1883, %v1885
        %v1887 = vadd.f32 %v1883, %v1886
        %vm1888 = vweird.f32 %v1825
        %vm1889 = vweird.f32 %v1883
        %vm1890 = vmor %vm1888, %vm1889
        %v1891 = vsel %vm1890, %v1883, %v1887
        %v1892 = vand.u32 2147483647, %v1825
        %vm1893 = vcmp.eq.f32.partialorder %v1892, 8.507059e+37
        %v1894 = vand.u32 %v1825, 2147483648
        %v1895 = vor.u32 1.1754944e-38, %v1894
        %v1896 = vsel %vm1893, %v1895, %v1891
        %v1897 = vrcp.pop %v1826
        %v1898 = vmul.f32 %v1826, %v1897
        %v1899 = vsub.f32 1.0, %v1898
        %v1900 = vmul.f32 %v1897, %v1899
        %v1901 = vadd.f32 %v1897, %v1900
        %vm1902 = vweird.f32 %v1826
        %vm1903 = vweird.f32 %v1897
        %vm1904 = vmor %vm1902, %vm1903
        %v1905 = vsel %vm1904, %v1897, %v1901
        %v1906 = vand.u32 2147483647, %v1826
        %vm1907 = vcmp.eq.f32.partialorder %v1906, 8.507059e+37
        %v1908 = vand.u32 %v1826, 2147483648
        %v1909 = vor.u32 1.1754944e-38, %v1908
        %v1910 = vsel %vm1907, %v1909, %v1905
        %v1911 = vmul.f32 %v1851, %v1868
        %v1912 = vmul.f32 %v1852, %v1882
        %v1913 = vmul.f32 %v1853, %v1896
        %v1914 = vmul.f32 %v1854, %v1910
        %s1915 = scalar_lea.vmem %s287, 64 [#allocation5]
        %1916 = vst [vmem:[%s1915] sm:$0xff] %v1911
        %1917 = vst [vmem:[%s1915 + $0x8] sm:$0xff] %v1912
        %1918 = vst [vmem:[%s1915 + $0x10] sm:$0xff] %v1913
        %1919 = vst [vmem:[%s1915 + $0x18] sm:$0xff] %v1914
        %v1920 = vmul.f32 %v851, %v944
        %v1921 = vmul.f32 %v854, %v947
        %v1922 = vmul.f32 %v857, %v950
        %v1923 = vmul.f32 %v860, %v953
        %v1924 = vrot.slane %v1920, 4
        %v1925 = vadd.f32 %v1920, %v1924
        %v1926 = vrot.slane %v1925, 2
        %v1927 = vadd.f32 %v1925, %v1926
        %v1928 = vrot.slane %v1927, 1
        %v1929 = vadd.f32 %v1927, %v1928
        %v1930 = vrot.slane %v1921, 4
        %v1931 = vadd.f32 %v1921, %v1930
        %v1932 = vrot.slane %v1931, 2
        %v1933 = vadd.f32 %v1931, %v1932
        %v1934 = vrot.slane %v1933, 1
        %v1935 = vadd.f32 %v1933, %v1934
        %v1936 = vrot.slane %v1922, 4
        %v1937 = vadd.f32 %v1922, %v1936
        %v1938 = vrot.slane %v1937, 2
        %v1939 = vadd.f32 %v1937, %v1938
        %v1940 = vrot.slane %v1939, 1
        %v1941 = vadd.f32 %v1939, %v1940
        %v1942 = vrot.slane %v1923, 4
        %v1943 = vadd.f32 %v1923, %v1942
        %v1944 = vrot.slane %v1943, 2
        %v1945 = vadd.f32 %v1943, %v1944
        %v1946 = vrot.slane %v1945, 1
        %v1947 = vadd.f32 %v1945, %v1946
        %v1948 = vmul.f32 %v851, %v985
        %v1949 = vmul.f32 %v854, %v988
        %v1950 = vmul.f32 %v857, %v991
        %v1951 = vmul.f32 %v860, %v994
        %v1952 = vrot.slane %v1948, 4
        %v1953 = vadd.f32 %v1948, %v1952
        %v1954 = vrot.slane %v1953, 2
        %v1955 = vadd.f32 %v1953, %v1954
        %v1956 = vrot.slane %v1955, 1
        %v1957 = vadd.f32 %v1955, %v1956
        %v1958 = vrot.slane %v1949, 4
        %v1959 = vadd.f32 %v1949, %v1958
        %v1960 = vrot.slane %v1959, 2
        %v1961 = vadd.f32 %v1959, %v1960
        %v1962 = vrot.slane %v1961, 1
        %v1963 = vadd.f32 %v1961, %v1962
        %v1964 = vrot.slane %v1950, 4
        %v1965 = vadd.f32 %v1950, %v1964
        %v1966 = vrot.slane %v1965, 2
        %v1967 = vadd.f32 %v1965, %v1966
        %v1968 = vrot.slane %v1967, 1
        %v1969 = vadd.f32 %v1967, %v1968
        %v1970 = vrot.slane %v1951, 4
        %v1971 = vadd.f32 %v1951, %v1970
        %v1972 = vrot.slane %v1971, 2
        %v1973 = vadd.f32 %v1971, %v1972
        %v1974 = vrot.slane %v1973, 1
        %v1975 = vadd.f32 %v1973, %v1974
        %v1976 = vmul.f32 %v851, %v1026
        %v1977 = vmul.f32 %v854, %v1029
        %v1978 = vmul.f32 %v857, %v1032
        %v1979 = vmul.f32 %v860, %v1035
        %v1980 = vrot.slane %v1976, 4
        %v1981 = vadd.f32 %v1976, %v1980
        %v1982 = vrot.slane %v1981, 2
        %v1983 = vadd.f32 %v1981, %v1982
        %v1984 = vrot.slane %v1983, 1
        %v1985 = vadd.f32 %v1983, %v1984
        %v1986 = vrot.slane %v1977, 4
        %v1987 = vadd.f32 %v1977, %v1986
        %v1988 = vrot.slane %v1987, 2
        %v1989 = vadd.f32 %v1987, %v1988
        %v1990 = vrot.slane %v1989, 1
        %v1991 = vadd.f32 %v1989, %v1990
        %v1992 = vrot.slane %v1978, 4
        %v1993 = vadd.f32 %v1978, %v1992
        %v1994 = vrot.slane %v1993, 2
        %v1995 = vadd.f32 %v1993, %v1994
        %v1996 = vrot.slane %v1995, 1
        %v1997 = vadd.f32 %v1995, %v1996
        %v1998 = vrot.slane %v1979, 4
        %v1999 = vadd.f32 %v1979, %v1998
        %v2000 = vrot.slane %v1999, 2
        %v2001 = vadd.f32 %v1999, %v2000
        %v2002 = vrot.slane %v2001, 1
        %v2003 = vadd.f32 %v2001, %v2002
        %v2004 = vmul.f32 %v851, %v1067
        %v2005 = vmul.f32 %v854, %v1070
        %v2006 = vmul.f32 %v857, %v1073
        %v2007 = vmul.f32 %v860, %v1076
        %v2008 = vrot.slane %v2004, 4
        %v2009 = vadd.f32 %v2004, %v2008
        %v2010 = vrot.slane %v2009, 2
        %v2011 = vadd.f32 %v2009, %v2010
        %v2012 = vrot.slane %v2011, 1
        %v2013 = vadd.f32 %v2011, %v2012
        %v2014 = vrot.slane %v2005, 4
        %v2015 = vadd.f32 %v2005, %v2014
        %v2016 = vrot.slane %v2015, 2
        %v2017 = vadd.f32 %v2015, %v2016
        %v2018 = vrot.slane %v2017, 1
        %v2019 = vadd.f32 %v2017, %v2018
        %v2020 = vrot.slane %v2006, 4
        %v2021 = vadd.f32 %v2006, %v2020
        %v2022 = vrot.slane %v2021, 2
        %v2023 = vadd.f32 %v2021, %v2022
        %v2024 = vrot.slane %v2023, 1
        %v2025 = vadd.f32 %v2023, %v2024
        %v2026 = vrot.slane %v2007, 4
        %v2027 = vadd.f32 %v2007, %v2026
        %v2028 = vrot.slane %v2027, 2
        %v2029 = vadd.f32 %v2027, %v2028
        %v2030 = vrot.slane %v2029, 1
        %v2031 = vadd.f32 %v2029, %v2030
        %v2032 = vmax.f32 %v1929, %v1957
        %v2033 = vmax.f32 %v1935, %v1963
        %v2034 = vmax.f32 %v1941, %v1969
        %v2035 = vmax.f32 %v1947, %v1975
        %v2036 = vmax.f32 %v2032, %v1985
        %v2037 = vmax.f32 %v2033, %v1991
        %v2038 = vmax.f32 %v2034, %v1997
        %v2039 = vmax.f32 %v2035, %v2003
        %v2040 = vmax.f32 %v2036, %v2013
        %v2041 = vmax.f32 %v2037, %v2019
        %v2042 = vmax.f32 %v2038, %v2025
        %v2043 = vmax.f32 %v2039, %v2031
        %v2044 = vsub.f32 %v1929, %v2040
        %v2045 = vsub.f32 %v1935, %v2041
        %v2046 = vsub.f32 %v1941, %v2042
        %v2047 = vsub.f32 %v1947, %v2043
        %v2048 = vmul.f32 %v2044, 1.442695
        %v2049 = vpow.pop %v2048
        %v2050 = vmul.f32 %v2045, 1.442695
        %v2051 = vpow.pop %v2050
        %v2052 = vmul.f32 %v2046, 1.442695
        %v2053 = vpow.pop %v2052
        %v2054 = vmul.f32 %v2047, 1.442695
        %v2055 = vpow.pop %v2054
        %v2056 = vsub.f32 %v1957, %v2040
        %v2057 = vsub.f32 %v1963, %v2041
        %v2058 = vsub.f32 %v1969, %v2042
        %v2059 = vsub.f32 %v1975, %v2043
        %v2060 = vmul.f32 %v2056, 1.442695
        %v2061 = vpow.pop %v2060
        %v2062 = vmul.f32 %v2057, 1.442695
        %v2063 = vpow.pop %v2062
        %v2064 = vmul.f32 %v2058, 1.442695
        %v2065 = vpow.pop %v2064
        %v2066 = vmul.f32 %v2059, 1.442695
        %v2067 = vpow.pop %v2066
        %v2068 = vsub.f32 %v1985, %v2040
        %v2069 = vsub.f32 %v1991, %v2041
        %v2070 = vsub.f32 %v1997, %v2042
        %v2071 = vsub.f32 %v2003, %v2043
        %v2072 = vmul.f32 %v2068, 1.442695
        %v2073 = vpow.pop %v2072
        %v2074 = vmul.f32 %v2069, 1.442695
        %v2075 = vpow.pop %v2074
        %v2076 = vmul.f32 %v2070, 1.442695
        %v2077 = vpow.pop %v2076
        %v2078 = vmul.f32 %v2071, 1.442695
        %v2079 = vpow.pop %v2078
        %v2080 = vsub.f32 %v2013, %v2040
        %v2081 = vsub.f32 %v2019, %v2041
        %v2082 = vsub.f32 %v2025, %v2042
        %v2083 = vsub.f32 %v2031, %v2043
        %v2084 = vmul.f32 %v2080, 1.442695
        %v2085 = vpow.pop %v2084
        %v2086 = vmul.f32 %v2081, 1.442695
        %v2087 = vpow.pop %v2086
        %v2088 = vmul.f32 %v2082, 1.442695
        %v2089 = vpow.pop %v2088
        %v2090 = vmul.f32 %v2083, 1.442695
        %v2091 = vpow.pop %v2090
        %v2092 = vadd.f32 %v2049, %v2061
        %v2093 = vadd.f32 %v2051, %v2063
        %v2094 = vadd.f32 %v2053, %v2065
        %v2095 = vadd.f32 %v2055, %v2067
        %v2096 = vadd.f32 %v2092, %v2073
        %v2097 = vadd.f32 %v2093, %v2075
        %v2098 = vadd.f32 %v2094, %v2077
        %v2099 = vadd.f32 %v2095, %v2079
        %v2100 = vadd.f32 %v2096, %v2085
        %v2101 = vadd.f32 %v2097, %v2087
        %v2102 = vadd.f32 %v2098, %v2089
        %v2103 = vadd.f32 %v2099, %v2091
        %v2104 = vmul.f32 %v2049, %v956
        %v2105 = vmul.f32 %v2051, %v959
        %v2106 = vmul.f32 %v2053, %v962
        %v2107 = vmul.f32 %v2055, %v965
        %v2108 = vmul.f32 %v2061, %v997
        %v2109 = vmul.f32 %v2063, %v1000
        %v2110 = vmul.f32 %v2065, %v1003
        %v2111 = vmul.f32 %v2067, %v1006
        %v2112 = vadd.f32 %v2104, %v2108
        %v2113 = vadd.f32 %v2105, %v2109
        %v2114 = vadd.f32 %v2106, %v2110
        %v2115 = vadd.f32 %v2107, %v2111
        %v2116 = vmul.f32 %v2073, %v1038
        %v2117 = vmul.f32 %v2075, %v1041
        %v2118 = vmul.f32 %v2077, %v1044
        %v2119 = vmul.f32 %v2079, %v1047
        %v2120 = vadd.f32 %v2112, %v2116
        %v2121 = vadd.f32 %v2113, %v2117
        %v2122 = vadd.f32 %v2114, %v2118
        %v2123 = vadd.f32 %v2115, %v2119
        %v2124 = vmul.f32 %v2085, %v1079
        %v2125 = vmul.f32 %v2087, %v1082
        %v2126 = vmul.f32 %v2089, %v1085
        %v2127 = vmul.f32 %v2091, %v1088
        %v2128 = vadd.f32 %v2120, %v2124
        %v2129 = vadd.f32 %v2121, %v2125
        %v2130 = vadd.f32 %v2122, %v2126
        %v2131 = vadd.f32 %v2123, %v2127
        %v2132 = vrcp.pop %v2100
        %v2133 = vmul.f32 %v2100, %v2132
        %v2134 = vsub.f32 1.0, %v2133
        %v2135 = vmul.f32 %v2132, %v2134
        %v2136 = vadd.f32 %v2132, %v2135
        %vm2137 = vweird.f32 %v2100
        %vm2138 = vweird.f32 %v2132
        %vm2139 = vmor %vm2137, %vm2138
        %v2140 = vsel %vm2139, %v2132, %v2136
        %v2141 = vand.u32 2147483647, %v2100
        %vm2142 = vcmp.eq.f32.partialorder %v2141, 8.507059e+37
        %v2143 = vand.u32 %v2100, 2147483648
        %v2144 = vor.u32 1.1754944e-38, %v2143
        %v2145 = vsel %vm2142, %v2144, %v2140
        %v2146 = vrcp.pop %v2101
        %v2147 = vmul.f32 %v2101, %v2146
        %v2148 = vsub.f32 1.0, %v2147
        %v2149 = vmul.f32 %v2146, %v2148
        %v2150 = vadd.f32 %v2146, %v2149
        %vm2151 = vweird.f32 %v2101
        %vm2152 = vweird.f32 %v2146
        %vm2153 = vmor %vm2151, %vm2152
        %v2154 = vsel %vm2153, %v2146, %v2150
        %v2155 = vand.u32 2147483647, %v2101
        %vm2156 = vcmp.eq.f32.partialorder %v2155, 8.507059e+37
        %v2157 = vand.u32 %v2101, 2147483648
        %v2158 = vor.u32 1.1754944e-38, %v2157
        %v2159 = vsel %vm2156, %v2158, %v2154
        %v2160 = vrcp.pop %v2102
        %v2161 = vmul.f32 %v2102, %v2160
        %v2162 = vsub.f32 1.0, %v2161
        %v2163 = vmul.f32 %v2160, %v2162
        %v2164 = vadd.f32 %v2160, %v2163
        %vm2165 = vweird.f32 %v2102
        %vm2166 = vweird.f32 %v2160
        %vm2167 = vmor %vm2165, %vm2166
        %v2168 = vsel %vm2167, %v2160, %v2164
        %v2169 = vand.u32 2147483647, %v2102
        %vm2170 = vcmp.eq.f32.partialorder %v2169, 8.507059e+37
        %v2171 = vand.u32 %v2102, 2147483648
        %v2172 = vor.u32 1.1754944e-38, %v2171
        %v2173 = vsel %vm2170, %v2172, %v2168
        %v2174 = vrcp.pop %v2103
        %v2175 = vmul.f32 %v2103, %v2174
        %v2176 = vsub.f32 1.0, %v2175
        %v2177 = vmul.f32 %v2174, %v2176
        %v2178 = vadd.f32 %v2174, %v2177
        %vm2179 = vweird.f32 %v2103
        %vm2180 = vweird.f32 %v2174
        %vm2181 = vmor %vm2179, %vm2180
        %v2182 = vsel %vm2181, %v2174, %v2178
        %v2183 = vand.u32 2147483647, %v2103
        %vm2184 = vcmp.eq.f32.partialorder %v2183, 8.507059e+37
        %v2185 = vand.u32 %v2103, 2147483648
        %v2186 = vor.u32 1.1754944e-38, %v2185
        %v2187 = vsel %vm2184, %v2186, %v2182
        %v2188 = vmul.f32 %v2128, %v2145
        %v2189 = vmul.f32 %v2129, %v2159
        %v2190 = vmul.f32 %v2130, %v2173
        %v2191 = vmul.f32 %v2131, %v2187
        %s2192 = scalar_lea.vmem %s287, 96 [#allocation5]
        %2193 = vst [vmem:[%s2192] sm:$0xff] %v2188
        %2194 = vst [vmem:[%s2192 + $0x8] sm:$0xff] %v2189
        %2195 = vst [vmem:[%s2192 + $0x10] sm:$0xff] %v2190
        %2196 = vst [vmem:[%s2192 + $0x18] sm:$0xff] %v2191
        %s2197 = sand.u32 %s151, 1
        %s2198 = scalar_lea.sflag [#allocation4], %s2197
        %s2199 = sand.u32 %s151, 1
        %s2200 = smul.addr %s2199, 128
        %s2201 = scalar_lea.vmem [#allocation5], %s2200
        // Predicated region
        $region41: #{tpu_custom_call.1} parent=35 // pred_check
          %p2202 = pneg %p161
        $region42: #{tpu_custom_call.1} parent=35 // pred_check_branch
          %2204 = sbr.rel (%p2202) target = $region44
        $region43: #{tpu_custom_call.1} parent=35 // pred_region
          %2206 = vsyncadd %s2198, 0
          %s2207 = smul.addr %s25, 16
          %s2208 = sadd.s32 %s26, %s2207
          %s2209 = smul.addr %s2208, 8
          %s2210 = scalar_lea.hbm %s4, %s2209
          %s2211 = sshll.u32 %s2201, 4
          %s2212 = int_to_ptr.vmem [resolvable:$true] %s2211
          %s2213 = sshll.u32 %s2210, 4
          %s2214 = int_to_ptr.hbm [resolvable:$true] %s2213
          %2219 = dma.vmem_to_hbm [thread:$0]  %s2212, 2048, %s2214, %s2198, 128, 128, 8
        $region44: #{tpu_custom_call.1} parent=35 // pred_fallthru
          _
      $region36: #{tpu_custom_call.1} parent=5 // pred_fallthru
        _
      %p2220 = scmp.le.s32.totalorder 2, %s16
      // Predicated region
      $region45: #{tpu_custom_call.1} parent=5 // pred_check
        %p2221 = pneg %p2220
      $region46: #{tpu_custom_call.1} parent=5 // pred_check_branch
        %2223 = sbr.rel (%p2221) target = $region48
      $region47: #{tpu_custom_call.1} parent=5 // pred_region
        %s2224 = ssub.s32 %s16, 2
        // Predicated region
        $region49: #{tpu_custom_call.1} parent=47 // pred_check
          %p2225 = pneg %p167
        $region50: #{tpu_custom_call.1} parent=47 // pred_check_branch
          %2227 = sbr.rel (%p2225) target = $region52
        $region51: #{tpu_custom_call.1} parent=47 // pred_region
          %s2228 = sand.u32 %s152, 1
          %s2229 = scalar_lea.sflag [#allocation4], %s2228
          %s2230 = sand.u32 %s152, 1
          %s2231 = smul.addr %s2230, 128
          %s2232 = scalar_lea.vmem [#allocation5], %s2231
          %2234 = dma.done %s2229, 2048
        $region52: #{tpu_custom_call.1} parent=47 // pred_fallthru
          _
      $region48: #{tpu_custom_call.1} parent=5 // pred_fallthru
        _
    $region6: #{tpu_custom_call.1} parent=1 // loop_footer
      %s20 = sadd.s32 1, %s16
    $region7: #{tpu_custom_call.1} parent=1 // loop_footer_branch
      %15 = sbr.rel target = $region3
    $region8: #{tpu_custom_call.1} parent=1 // loop_exit
      _
    %2235 = vsyncpa [#allocation3], 1
    %s2236 = scalar_lea.sflag [#allocation3], 1
    %2237 = vsyncpa %s2236, 1
    %2238 = vsyncpa [#allocation4], 1
    %s2239 = scalar_lea.sflag [#allocation4], 1
    %2240 = vsyncpa %s2239, 1

</llo_original>
